<compile_context>
chip_gen: v7x
topology: tpu7x:2x2x1
jax: 0.10.0
libtpu: 0.0.40
codegen_flags: <defaults>
</compile_context>

<pallas_src>
import functools
import math

import jax
import jax.numpy as jnp
from jax.experimental import pallas as pl
from jax.experimental.pallas import tpu as pltpu

K_DIM = 128  # fixed `self.k = 128` in the module


def si_ext_attn_kernel(x_ref, wq_ref, bq_ref, wa_ref, wout_ref, bout_ref,
                       o_ref, cat_ref, *, num_heads):
    xb = x_ref[0]                                               # (C, N) bf16

    # All per-head queries (with conv1 folded in) in ONE M = H*k matmul:
    #   q_all = [Wq'_0; ...; Wq'_{H-1}] @ x + [bq_0; ...; bq_{H-1}]
    q_all = jnp.dot(wq_ref[...], xb,
                    preferred_element_type=jnp.float32) + bq_ref[...]  # (H*k, N)

    # Iterative alternation, concat-free:
    #   alt <- W_alt @ [alt; q_{h+1}]   done as one K = 2k matmul.
    alt = q_all[:K_DIM]                                          # (k, N) f32
    for h in range(num_heads - 1):
        if h == 0:
            # first iteration: [q_0; q_1] is already contiguous in q_all
            cat = q_all[:2 * K_DIM].astype(jnp.bfloat16)
        else:
            cat_ref[:K_DIM, :] = alt.astype(jnp.bfloat16)
            cat_ref[K_DIM:, :] = (
                q_all[(h + 1) * K_DIM:(h + 2) * K_DIM].astype(jnp.bfloat16))
            cat = cat_ref[...]
        alt = jnp.dot(wa_ref[h], cat, preferred_element_type=jnp.float32)

    # softmax over the spatial axis (torch: dim=-1 on (b, k, N)) -- f32
    m = jnp.max(alt, axis=-1, keepdims=True)
    e = jnp.exp(alt - m)
    attn = e * pl.reciprocal(jnp.sum(e, axis=-1, keepdims=True), approx=True)
    # double-normalization over the k (channel) axis (torch: dim=1)
    attn = attn * pl.reciprocal(1e-9 + jnp.sum(attn, axis=0, keepdims=True),
                                approx=True)

    # fused linear + conv2 + BN:  W_out (C,k) @ attn (k,N) + b_out (C,1)
    z = jnp.dot(wout_ref[...], attn.astype(jnp.bfloat16),
                preferred_element_type=jnp.float32) + bout_ref[...]

    # residual + ReLU
    o_ref[0] = jnp.maximum(z + xb.astype(jnp.float32), 0.0).astype(o_ref.dtype)


def make_params(dim, num_heads, key):
    """Deterministic init mirroring the module's __init__ scaling."""
    ks = jax.random.split(key, 6 + num_heads + max(num_heads - 1, 1))
    it = iter(ks)

    # Conv2d(dim, dim, 1) with bias: weight std = sqrt(2 / (1*1*dim))
    w1 = jax.random.normal(next(it), (dim, dim), jnp.float32) * math.sqrt(2.0 / dim)
    b1 = jax.random.normal(next(it), (dim,), jnp.float32) * 0.01

    # Conv1d(dim, k, 1, bias=False): std = sqrt(2 / (1*k))
    wq = jnp.stack([
        jax.random.normal(next(it), (K_DIM, dim), jnp.float32) * math.sqrt(2.0 / K_DIM)
        for _ in range(num_heads)
    ])  # (H, k, dim)

    # Conv1d(2k, k, 1, bias=False): std = sqrt(2 / (1*k))
    n_alt = max(num_heads - 1, 1)
    wa = jnp.stack([
        jax.random.normal(next(it), (K_DIM, 2 * K_DIM), jnp.float32) * math.sqrt(2.0 / K_DIM)
        for _ in range(n_alt)
    ])  # (H-1, k, 2k)  (dummy row if num_heads == 1, never used)

    # Conv1d(k, dim, 1, bias=False): std = sqrt(2 / (1*dim))
    wl = jax.random.normal(next(it), (dim, K_DIM), jnp.float32) * math.sqrt(2.0 / dim)

    # Conv2d(dim, dim, 1, bias=False): std = sqrt(2 / dim)
    w2 = jax.random.normal(next(it), (dim, dim), jnp.float32) * math.sqrt(2.0 / dim)

    # BatchNorm2d(dim): gamma=1, beta=0, running_mean=0, running_var=1, eps=1e-5
    eps = 1e-5
    bn_scale = jnp.ones((dim,), jnp.float32) / jnp.sqrt(1.0 + eps)
    bn_bias = jnp.zeros((dim,), jnp.float32)

    return dict(w1=w1, b1=b1, wq=wq, wa=wa, wl=wl, w2=w2,
                bn_scale=bn_scale, bn_bias=bn_bias)


def si_ext_attn(x_nchw, params, num_heads):
    b, c, h, w = x_nchw.shape
    n = h * w

    # Channel-major: NCHW -> (b, C, N) is a pure reshape (no transpose / no
    # extra HBM traffic).  Matmul operands go to bf16; biases stay f32.
    x = x_nchw.reshape(b, c, n).astype(jnp.bfloat16)

    # --- algebraic weight folding (f32, then one bf16 cast) -----------------
    # conv1 folded into query weights:  Wq'_h = Wq_h @ W1 ; bq_h = Wq_h @ b1
    wq_folded = jnp.einsum("hkc,cd->hkd", params["wq"], params["w1"])   # (H,k,C)
    bq_folded = jnp.einsum("hkc,c->hk", params["wq"], params["b1"])     # (H,k)
    wq_all = wq_folded.reshape(num_heads * K_DIM, c).astype(jnp.bfloat16)
    bq_all = bq_folded.reshape(num_heads * K_DIM, 1).astype(jnp.float32)

    # linear + conv2 + BN folded:  W_out = bn_scale * (W2 @ Wl) ; b_out = bn_bias
    wout = (params["bn_scale"][:, None]
            * (params["w2"] @ params["wl"])).astype(jnp.bfloat16)       # (C, k)
    bout = params["bn_bias"].reshape(c, 1).astype(jnp.float32)          # (C, 1)

    # full (k, 2k) alternation weights for the single K = 2k matmul
    wa = params["wa"].astype(jnp.bfloat16)                              # (H-1,k,2k)
    n_alt = wa.shape[0]

    # --- cost estimate (advisory) -------------------------------------------
    flops = int(2 * b * n * (num_heads * K_DIM * c
                             + max(num_heads - 1, 0) * K_DIM * 2 * K_DIM
                             + c * K_DIM))
    transcendentals = int(b * K_DIM * n)
    bytes_accessed = int(b * c * n * (2 + 2)
                         + 2 * (wq_all.size + wa.size + wout.size)
                         + 4 * (bq_all.size + bout.size))

    out = pl.pallas_call(
        functools.partial(si_ext_attn_kernel, num_heads=num_heads),
        out_shape=jax.ShapeDtypeStruct((b, c, n), jnp.bfloat16),
        grid_spec=pltpu.PrefetchScalarGridSpec(
            num_scalar_prefetch=0,
            grid=(b,),
            in_specs=[
                pl.BlockSpec((1, c, n), lambda i: (i, 0, 0)),                     # x
                pl.BlockSpec((num_heads * K_DIM, c), lambda i: (0, 0)),           # wq_all
                pl.BlockSpec((num_heads * K_DIM, 1), lambda i: (0, 0)),           # bq_all
                pl.BlockSpec((n_alt, K_DIM, 2 * K_DIM), lambda i: (0, 0, 0)),     # wa
                pl.BlockSpec((c, K_DIM), lambda i: (0, 0)),                       # wout
                pl.BlockSpec((c, 1), lambda i: (0, 0)),                           # bout
            ],
            out_specs=pl.BlockSpec((1, c, n), lambda i: (i, 0, 0)),
            scratch_shapes=[pltpu.VMEM((2 * K_DIM, n), jnp.bfloat16)],            # cat
        ),
        compiler_params=pltpu.CompilerParams(
            dimension_semantics=("parallel",),
            vmem_limit_bytes=64 * 1024 * 1024,
        ),
        cost_estimate=pl.CostEstimate(flops=flops,
                                      transcendentals=transcendentals,
                                      bytes_accessed=bytes_accessed),
    )(x, wq_all, bq_all, wa, wout, bout)

    # (b, C, N) -> NCHW is again a pure reshape.
    return out.reshape(b, c, h, w)


def si_ext_attn_ref(x_nchw, params, num_heads):
    """Pure-JAX f32 reference with identical semantics (NCHW, like PyTorch)."""
    b, c, h, w = x_nchw.shape
    n = h * w
    idn = x_nchw
    x = jnp.einsum("oc,bchw->bohw", params["w1"], x_nchw) + params["b1"][None, :, None, None]
    x = x.reshape(b, c, n)                                          # (b, c, N)
    qs = [jnp.einsum("kc,bcn->bkn", params["wq"][i], x) for i in range(num_heads)]
    alt = qs[0]
    for i in range(num_heads - 1):
        cat = jnp.concatenate([alt, qs[i + 1]], axis=1)             # (b, 2k, N)
        alt = jnp.einsum("kc,bcn->bkn", params["wa"][i], cat)
    attn = jax.nn.softmax(alt, axis=-1)
    attn = attn / (1e-9 + jnp.sum(attn, axis=1, keepdims=True))
    x = jnp.einsum("ck,bkn->bcn", params["wl"], attn)               # (b, c, N)
    x = x.reshape(b, c, h, w)
    x = jnp.einsum("oc,bchw->bohw", params["w2"], x)
    x = x * params["bn_scale"][None, :, None, None] + params["bn_bias"][None, :, None, None]
    return jax.nn.relu(x + idn)


if __name__ == "__main__":
    dim, num_heads = 32, 2
    b, h, w = 2, 16, 16   # N = 256 -> lane-dense blocks

    key = jax.random.PRNGKey(0)
    k_x, k_p = jax.random.split(key)
    x = jax.random.normal(k_x, (b, dim, h, w), jnp.float32)
    params = make_params(dim, num_heads, k_p)

    out = si_ext_attn(x, params, num_heads)
    out = jax.block_until_ready(out)

    ref = jax.block_until_ready(si_ext_attn_ref(x, params, num_heads))
    assert out.shape == (b, dim, h, w)
    # bf16 input/output + bf16 matmul operands + approx reciprocals -> relaxed
    # tolerance vs the f32 reference.
    assert jnp.allclose(out.astype(jnp.float32), ref, rtol=3e-2, atol=3e-2), \
        "mismatch vs reference"

    print("KERNEL_OK")
</pallas_src>

<mosaic_0001>
module attributes {stable_mosaic.version = 11 : i64} {
  func.func @si_ext_attn_kernel(%arg0: i32, %arg1: memref<1x32x256xbf16, #tpu.memory_space<vmem>>, %arg2: memref<256x32xbf16, #tpu.memory_space<vmem>>, %arg3: memref<256x1xf32, #tpu.memory_space<vmem>>, %arg4: memref<1x128x256xbf16, #tpu.memory_space<vmem>>, %arg5: memref<32x128xbf16, #tpu.memory_space<vmem>>, %arg6: memref<32x1xf32, #tpu.memory_space<vmem>>, %arg7: memref<1x32x256xbf16, #tpu.memory_space<vmem>>, %arg8: memref<256x256xbf16, #tpu.memory_space<vmem>>) attributes {dimension_semantics = [#tpu.dimension_semantics<parallel>], iteration_bounds = array<i64: 2>, scalar_prefetch = 0 : i64, scratch_operands = 1 : i64, tpu.core_type = #tpu.core_type<tc>, window_params = [{transform_indices = @transform_0, window_bounds = array<i64: 1, 32, 256>}, {pipeline_mode = #tpu.pipeline_mode<synchronous>, transform_indices = @transform_1, window_bounds = array<i64: 256, 32>}, {pipeline_mode = #tpu.pipeline_mode<synchronous>, transform_indices = @transform_2, window_bounds = array<i64: 256, 1>}, {pipeline_mode = #tpu.pipeline_mode<synchronous>, transform_indices = @transform_3, window_bounds = array<i64: 1, 128, 256>}, {pipeline_mode = #tpu.pipeline_mode<synchronous>, transform_indices = @transform_4, window_bounds = array<i64: 32, 128>}, {pipeline_mode = #tpu.pipeline_mode<synchronous>, transform_indices = @transform_5, window_bounds = array<i64: 32, 1>}, {transform_indices = @transform_6, window_bounds = array<i64: 1, 32, 256>}]} {
    %c0 = arith.constant 0 : index
    %c0_0 = arith.constant 0 : index
    %c0_1 = arith.constant 0 : index
    %0 = vector.load %arg1[%c0, %c0_0, %c0_1] : memref<1x32x256xbf16, #tpu.memory_space<vmem>>, vector<1x32x256xbf16>
    %1 = vector.shape_cast %0 : vector<1x32x256xbf16> to vector<32x256xbf16>
    %c0_2 = arith.constant 0 : index
    %c0_3 = arith.constant 0 : index
    %2 = vector.load %arg2[%c0_2, %c0_3] : memref<256x32xbf16, #tpu.memory_space<vmem>>, vector<256x32xbf16>
    %cst = arith.constant dense<0.000000e+00> : vector<256x256xf32>
    %3 = tpu.matmul %2, %1, %cst {dimension_numbers = #tpu.dot_dimension_numbers<[1], [0], [0], [1], [0, 0, 1, 1], [], []>} : vector<256x32xbf16>, vector<32x256xbf16>, vector<256x256xf32> -> vector<256x256xf32>
    %c0_4 = arith.constant 0 : index
    %c0_5 = arith.constant 0 : index
    %4 = vector.load %arg3[%c0_4, %c0_5] : memref<256x1xf32, #tpu.memory_space<vmem>>, vector<256x1xf32>
    %5 = vector.broadcast %4 : vector<256x1xf32> to vector<256x256xf32>
    %6 = arith.addf %3, %5 : vector<256x256xf32>
    %7 = arith.truncf %6 : vector<256x256xf32> to vector<256x256xbf16>
    %c0_6 = arith.constant 0 : index
    %c0_7 = arith.constant 0 : index
    %c0_8 = arith.constant 0 : index
    %8 = vector.load %arg4[%c0_6, %c0_7, %c0_8] : memref<1x128x256xbf16, #tpu.memory_space<vmem>>, vector<1x128x256xbf16>
    %9 = vector.shape_cast %8 : vector<1x128x256xbf16> to vector<128x256xbf16>
    %cst_9 = arith.constant dense<0.000000e+00> : vector<128x256xf32>
    %10 = tpu.matmul %9, %7, %cst_9 {dimension_numbers = #tpu.dot_dimension_numbers<[1], [0], [0], [1], [0, 0, 1, 1], [], []>} : vector<128x256xbf16>, vector<256x256xbf16>, vector<128x256xf32> -> vector<128x256xf32>
    %cst_10 = arith.constant dense<0xFF800000> : vector<128xf32>
    %11 = vector.multi_reduction <maximumf>, %10, %cst_10 [1] : vector<128x256xf32> to vector<128xf32>
    %12 = vector.shape_cast %11 : vector<128xf32> to vector<128x1xf32>
    %13 = vector.broadcast %12 : vector<128x1xf32> to vector<128x256xf32>
    %14 = arith.subf %10, %13 : vector<128x256xf32>
    %15 = math.exp %14 : vector<128x256xf32>
    %cst_11 = arith.constant dense<0.000000e+00> : vector<128xf32>
    %16 = vector.multi_reduction <add>, %15, %cst_11 [1] : vector<128x256xf32> to vector<128xf32>
    %17 = vector.shape_cast %16 : vector<128xf32> to vector<128x1xf32>
    %18 = tpu.reciprocal %17 {approx = true} : vector<128x1xf32> -> vector<128x1xf32>
    %19 = vector.broadcast %18 : vector<128x1xf32> to vector<128x256xf32>
    %20 = arith.mulf %15, %19 : vector<128x256xf32>
    %cst_12 = arith.constant dense<0.000000e+00> : vector<256xf32>
    %21 = vector.multi_reduction <add>, %20, %cst_12 [0] : vector<128x256xf32> to vector<256xf32>
    %22 = vector.shape_cast %21 : vector<256xf32> to vector<1x256xf32>
    %cst_13 = arith.constant 9.99999971E-10 : f32
    %23 = vector.broadcast %cst_13 : f32 to vector<1x256xf32>
    %24 = arith.addf %23, %22 : vector<1x256xf32>
    %25 = tpu.reciprocal %24 {approx = true} : vector<1x256xf32> -> vector<1x256xf32>
    %26 = vector.broadcast %25 : vector<1x256xf32> to vector<128x256xf32>
    %27 = arith.mulf %20, %26 : vector<128x256xf32>
    %c0_14 = arith.constant 0 : index
    %c0_15 = arith.constant 0 : index
    %28 = vector.load %arg5[%c0_14, %c0_15] : memref<32x128xbf16, #tpu.memory_space<vmem>>, vector<32x128xbf16>
    %29 = arith.truncf %27 : vector<128x256xf32> to vector<128x256xbf16>
    %cst_16 = arith.constant dense<0.000000e+00> : vector<32x256xf32>
    %30 = tpu.matmul %28, %29, %cst_16 {dimension_numbers = #tpu.dot_dimension_numbers<[1], [0], [0], [1], [0, 0, 1, 1], [], []>} : vector<32x128xbf16>, vector<128x256xbf16>, vector<32x256xf32> -> vector<32x256xf32>
    %c0_17 = arith.constant 0 : index
    %c0_18 = arith.constant 0 : index
    %31 = vector.load %arg6[%c0_17, %c0_18] : memref<32x1xf32, #tpu.memory_space<vmem>>, vector<32x1xf32>
    %32 = vector.broadcast %31 : vector<32x1xf32> to vector<32x256xf32>
    %33 = arith.addf %30, %32 : vector<32x256xf32>
    %34 = arith.extf %1 : vector<32x256xbf16> to vector<32x256xf32>
    %35 = arith.addf %33, %34 : vector<32x256xf32>
    %cst_19 = arith.constant 0.000000e+00 : f32
    %36 = vector.broadcast %cst_19 : f32 to vector<32x256xf32>
    %37 = arith.maximumf %35, %36 : vector<32x256xf32>
    %38 = arith.truncf %37 : vector<32x256xf32> to vector<32x256xbf16>
    %c0_20 = arith.constant 0 : index
    %c0_21 = arith.constant 0 : index
    %c0_22 = arith.constant 0 : index
    %39 = vector.load %arg7[%c0_20, %c0_21, %c0_22] : memref<1x32x256xbf16, #tpu.memory_space<vmem>>, vector<1x32x256xbf16>
    %40 = vector.shape_cast %39 : vector<1x32x256xbf16> to vector<32x256xbf16>
    %41 = vector.shape_cast %38 : vector<32x256xbf16> to vector<1x32x256xbf16>
    tpu.vector_store %arg7[%c0_20, %c0_21, %c0_22], %41 {strides = array<i32>} : memref<1x32x256xbf16, #tpu.memory_space<vmem>>, vector<1x32x256xbf16>,
    return
  }
  func.func @transform_0(%arg0: i32) -> (i32, i32, i32) {
    %c0_i32 = arith.constant 0 : i32
    %c0_i32_0 = arith.constant 0 : i32
    %c0_i32_1 = arith.constant 0 : i32
    return %arg0, %c0_i32, %c0_i32_0 : i32, i32, i32
  }
  func.func @transform_1(%arg0: i32) -> (i32, i32) {
    %c0_i32 = arith.constant 0 : i32
    %c0_i32_0 = arith.constant 0 : i32
    %c0_i32_1 = arith.constant 0 : i32
    return %c0_i32, %c0_i32_0 : i32, i32
  }
  func.func @transform_2(%arg0: i32) -> (i32, i32) {
    %c0_i32 = arith.constant 0 : i32
    %c0_i32_0 = arith.constant 0 : i32
    %c0_i32_1 = arith.constant 0 : i32
    return %c0_i32, %c0_i32_0 : i32, i32
  }
  func.func @transform_3(%arg0: i32) -> (i32, i32, i32) {
    %c0_i32 = arith.constant 0 : i32
    %c0_i32_0 = arith.constant 0 : i32
    %c0_i32_1 = arith.constant 0 : i32
    %c0_i32_2 = arith.constant 0 : i32
    return %c0_i32, %c0_i32_0, %c0_i32_1 : i32, i32, i32
  }
  func.func @transform_4(%arg0: i32) -> (i32, i32) {
    %c0_i32 = arith.constant 0 : i32
    %c0_i32_0 = arith.constant 0 : i32
    %c0_i32_1 = arith.constant 0 : i32
    return %c0_i32, %c0_i32_0 : i32, i32
  }
  func.func @transform_5(%arg0: i32) -> (i32, i32) {
    %c0_i32 = arith.constant 0 : i32
    %c0_i32_0 = arith.constant 0 : i32
    %c0_i32_1 = arith.constant 0 : i32
    return %c0_i32, %c0_i32_0 : i32, i32
  }
  func.func @transform_6(%arg0: i32) -> (i32, i32, i32) {
    %c0_i32 = arith.constant 0 : i32
    %c0_i32_0 = arith.constant 0 : i32
    %c0_i32_1 = arith.constant 0 : i32
    return %arg0, %c0_i32, %c0_i32_0 : i32, i32, i32
  }
}

</mosaic_0001>

<llo_original>
// kernel: tpu_custom_call.1
$region0: #{tpu_custom_call.1}
  #allocation0 [shape = 'u32[]', space=smem, size = 0x4, offset = 0x4, fixed_abs, tag = 'smem constant byte address 0x4 - core index']
  #allocation1 [shape = 'u32[144,128]{1,0:T(1,128)}', space=vmem, size = 0x12000, scoped, tag = 'internal scratch']
  #allocation2 [shape = 'bf16[256,256]{1,0:T(16,128)(2,1)}', space=vmem, size = 0x20000, scoped, tag = 'scratch operand']
  %s0 = inlined_call_operand.hbm [shape: bf16[2,32,256], index: 0, kind: input, shape index: {}]
  %s1 = inlined_call_operand.hbm [shape: bf16[256,32], index: 1, kind: input, shape index: {}]
  %s2 = inlined_call_operand.hbm [shape: f32[256,1], index: 2, kind: input, shape index: {}]
  %s3 = inlined_call_operand.hbm [shape: bf16[1,128,256], index: 3, kind: input, shape index: {}]
  %s4 = inlined_call_operand.hbm [shape: bf16[32,128], index: 4, kind: input, shape index: {}]
  %s5 = inlined_call_operand.hbm [shape: f32[32,1], index: 5, kind: input, shape index: {}]
  %s6 = inlined_call_operand.hbm [shape: bf16[2,32,256], index: 6, kind: output, shape index: {}]
  %s7 = sld [smem:[#allocation0]]
  $region81: #{tpu_custom_call.1} parent=0
    _
  %s9 = ssub.s32 1, %s7
  %s10 = scalar_select 0, %s9, %s7
  $region1: #{tpu_custom_call.1} parent=0
    #allocation3 [shape = 'u8[32768]{0}', space=vmem, size = 0x8000, scoped, tag = 'input window, operand 0']
    #allocation4 [shape = 's32[2]{0}', space=sflag, size = 0x8, scoped, tag = 'scoped memory for tpu_custom_call.1']
    #allocation5 [shape = 's32[2]{0}', space=sflag, size = 0x8, scoped, tag = 'scoped memory for tpu_custom_call.1']
    #allocation6 [shape = 'u8[65536]{0}', space=vmem, size = 0x10000, scoped, tag = 'input window, operand 1, single buffered']
    #allocation7 [shape = 's32[1]{0}', space=sflag, size = 0x4, scoped, tag = 'scoped memory for tpu_custom_call.1']
    #allocation8 [shape = 'u8[131072]{0}', space=vmem, size = 0x20000, scoped, tag = 'input window, operand 2, single buffered']
    #allocation9 [shape = 'u8[65536]{0}', space=vmem, size = 0x10000, scoped, tag = 'input window, operand 3, single buffered']
    #allocation10 [shape = 's32[1]{0}', space=sflag, size = 0x4, scoped, tag = 'scoped memory for tpu_custom_call.1']
    #allocation11 [shape = 'u8[8192]{0}', space=vmem, size = 0x2000, scoped, tag = 'input window, operand 4, single buffered']
    #allocation12 [shape = 'u8[16384]{0}', space=vmem, size = 0x4000, scoped, tag = 'input window, operand 5, single buffered']
    #allocation13 [shape = 's32[1]{0}', space=sflag, size = 0x4, scoped, tag = 'scoped memory for tpu_custom_call.1']
    #allocation14 [shape = 'u8[32768]{0}', space=vmem, size = 0x8000, scoped, tag = 'output window, operand 0']
    %11 = vsyncpa [#allocation4], 0
    %s12 = scalar_lea.sflag [#allocation4], 1
    %13 = vsyncpa %s12, 0
    %14 = vsyncpa [#allocation7], 0
    %15 = vsyncpa [#allocation10], 0
    %16 = vsyncpa [#allocation13], 0
    %17 = vsyncpa [#allocation5], 0
    %s18 = scalar_lea.sflag [#allocation5], 1
    %19 = vsyncpa %s18, 0
    loop: start=0, step=1, limit=4
    $region2: #{tpu_custom_call.1} parent=1 // loop_pre_header
      _
    $region3: #{tpu_custom_call.1} parent=1 // loop_header
      %s21 = sphi 0, %s25
      %p22 = scmp.ge.s32.totalorder %s21, 4
      %s31 = sphi 0, %s33
      %s34 = sphi 0, %s31
      %s35 = sphi 0, %s34
      %s51 = sphi 0, %s35
      %s55 = sphi 0, %s55
      %s57 = sphi 0, %s55
      %s58 = sphi 0, %s57
      %s72 = sphi 0, %s58
      %s76 = sphi 0, %s76
      %s78 = sphi 0, %s76
      %s79 = sphi 0, %s78
      %s93 = sphi 0, %s79
      %s97 = sphi 0, %s97
      %s99 = sphi 0, %s97
      %s100 = sphi 0, %s99
      %s114 = sphi 0, %s100
      %s118 = sphi 0, %s118
      %s120 = sphi 0, %s118
      %s121 = sphi 0, %s120
      %s135 = sphi 0, %s121
      %s139 = sphi 0, %s139
      %s141 = sphi 0, %s139
      %s142 = sphi 0, %s141
      %s156 = sphi 0, %s142
      %s162 = sphi 0, %s164
      %s165 = sphi 0, %s162
      %s166 = sphi 0, %s165
      %s182 = sphi 0, %s166
    $region4: #{tpu_custom_call.1} parent=1 // loop_header_branch
      %24 = sbr.rel (%p22) target = $region8
    $region5: #{tpu_custom_call.1} parent=1 // loop_body
      %s26 = ssub.s32 %s21, 1
      %s27 = ssub.s32 %s21, 2
      %s28 = sadd.s32 %s21, 1
      %s29 = ssub.s32 %s21, %s28
      %p30 = scmp.eq.s32.totalorder %s29, 0
      %s32 = sadd.s32 %s31, 1
      %s33 = scalar_select %p30, %s31, %s32
      %p36 = pneg %p30
      %p37 = scmp.eq.s32.totalorder %s21, 1
      %p38 = por %p36, %p37
      %p39 = scmp.ne.s32.totalorder %s31, %s34
      %p40 = scmp.eq.s32.totalorder %s21, 0
      %p41 = por %p39, %p40
      %p42 = scmp.ne.s32.totalorder %s31, %s34
      %p43 = scmp.eq.s32.totalorder %s26, 1
      %p44 = por %p42, %p43
      %p45 = scmp.ne.s32.totalorder %s34, %s35
      %p46 = scmp.eq.s32.totalorder %s26, 0
      %p47 = por %p45, %p46
      %p48 = scmp.ne.s32.totalorder %s34, %s35
      %p49 = scmp.eq.s32.totalorder %s27, 1
      %p50 = por %p48, %p49
      %p52 = scmp.ne.s32.totalorder %s35, %s51
      %p53 = scmp.eq.s32.totalorder %s27, 0
      %p54 = por %p52, %p53
      %s56 = sadd.s32 %s55, 1
      %p59 = scmp.eq.s32.totalorder %s21, 1
      %p60 = scmp.ne.s32.totalorder %s55, %s57
      %p61 = scmp.eq.s32.totalorder %s21, 0
      %p62 = por %p60, %p61
      %p63 = scmp.ne.s32.totalorder %s55, %s57
      %p64 = scmp.eq.s32.totalorder %s26, 1
      %p65 = por %p63, %p64
      %p66 = scmp.ne.s32.totalorder %s57, %s58
      %p67 = scmp.eq.s32.totalorder %s26, 0
      %p68 = por %p66, %p67
      %p69 = scmp.ne.s32.totalorder %s57, %s58
      %p70 = scmp.eq.s32.totalorder %s27, 1
      %p71 = por %p69, %p70
      %p73 = scmp.ne.s32.totalorder %s58, %s72
      %p74 = scmp.eq.s32.totalorder %s27, 0
      %p75 = por %p73, %p74
      %s77 = sadd.s32 %s76, 1
      %p80 = scmp.eq.s32.totalorder %s21, 1
      %p81 = scmp.ne.s32.totalorder %s76, %s78
      %p82 = scmp.eq.s32.totalorder %s21, 0
      %p83 = por %p81, %p82
      %p84 = scmp.ne.s32.totalorder %s76, %s78
      %p85 = scmp.eq.s32.totalorder %s26, 1
      %p86 = por %p84, %p85
      %p87 = scmp.ne.s32.totalorder %s78, %s79
      %p88 = scmp.eq.s32.totalorder %s26, 0
      %p89 = por %p87, %p88
      %p90 = scmp.ne.s32.totalorder %s78, %s79
      %p91 = scmp.eq.s32.totalorder %s27, 1
      %p92 = por %p90, %p91
      %p94 = scmp.ne.s32.totalorder %s79, %s93
      %p95 = scmp.eq.s32.totalorder %s27, 0
      %p96 = por %p94, %p95
      %s98 = sadd.s32 %s97, 1
      %p101 = scmp.eq.s32.totalorder %s21, 1
      %p102 = scmp.ne.s32.totalorder %s97, %s99
      %p103 = scmp.eq.s32.totalorder %s21, 0
      %p104 = por %p102, %p103
      %p105 = scmp.ne.s32.totalorder %s97, %s99
      %p106 = scmp.eq.s32.totalorder %s26, 1
      %p107 = por %p105, %p106
      %p108 = scmp.ne.s32.totalorder %s99, %s100
      %p109 = scmp.eq.s32.totalorder %s26, 0
      %p110 = por %p108, %p109
      %p111 = scmp.ne.s32.totalorder %s99, %s100
      %p112 = scmp.eq.s32.totalorder %s27, 1
      %p113 = por %p111, %p112
      %p115 = scmp.ne.s32.totalorder %s100, %s114
      %p116 = scmp.eq.s32.totalorder %s27, 0
      %p117 = por %p115, %p116
      %s119 = sadd.s32 %s118, 1
      %p122 = scmp.eq.s32.totalorder %s21, 1
      %p123 = scmp.ne.s32.totalorder %s118, %s120
      %p124 = scmp.eq.s32.totalorder %s21, 0
      %p125 = por %p123, %p124
      %p126 = scmp.ne.s32.totalorder %s118, %s120
      %p127 = scmp.eq.s32.totalorder %s26, 1
      %p128 = por %p126, %p127
      %p129 = scmp.ne.s32.totalorder %s120, %s121
      %p130 = scmp.eq.s32.totalorder %s26, 0
      %p131 = por %p129, %p130
      %p132 = scmp.ne.s32.totalorder %s120, %s121
      %p133 = scmp.eq.s32.totalorder %s27, 1
      %p134 = por %p132, %p133
      %p136 = scmp.ne.s32.totalorder %s121, %s135
      %p137 = scmp.eq.s32.totalorder %s27, 0
      %p138 = por %p136, %p137
      %s140 = sadd.s32 %s139, 1
      %p143 = scmp.eq.s32.totalorder %s21, 1
      %p144 = scmp.ne.s32.totalorder %s139, %s141
      %p145 = scmp.eq.s32.totalorder %s21, 0
      %p146 = por %p144, %p145
      %p147 = scmp.ne.s32.totalorder %s139, %s141
      %p148 = scmp.eq.s32.totalorder %s26, 1
      %p149 = por %p147, %p148
      %p150 = scmp.ne.s32.totalorder %s141, %s142
      %p151 = scmp.eq.s32.totalorder %s26, 0
      %p152 = por %p150, %p151
      %p153 = scmp.ne.s32.totalorder %s141, %s142
      %p154 = scmp.eq.s32.totalorder %s27, 1
      %p155 = por %p153, %p154
      %p157 = scmp.ne.s32.totalorder %s142, %s156
      %p158 = scmp.eq.s32.totalorder %s27, 0
      %p159 = por %p157, %p158
      %s160 = ssub.s32 %s21, %s28
      %p161 = scmp.eq.s32.totalorder %s160, 0
      %s163 = sadd.s32 %s162, 1
      %s164 = scalar_select %p161, %s162, %s163
      %p167 = pneg %p161
      %p168 = scmp.eq.s32.totalorder %s21, 1
      %p169 = por %p167, %p168
      %p170 = scmp.ne.s32.totalorder %s162, %s165
      %p171 = scmp.eq.s32.totalorder %s21, 0
      %p172 = por %p170, %p171
      %p173 = scmp.ne.s32.totalorder %s162, %s165
      %p174 = scmp.eq.s32.totalorder %s26, 1
      %p175 = por %p173, %p174
      %p176 = scmp.ne.s32.totalorder %s165, %s166
      %p177 = scmp.eq.s32.totalorder %s26, 0
      %p178 = por %p176, %p177
      %p179 = scmp.ne.s32.totalorder %s165, %s166
      %p180 = scmp.eq.s32.totalorder %s27, 1
      %p181 = por %p179, %p180
      %p183 = scmp.ne.s32.totalorder %s166, %s182
      %p184 = scmp.eq.s32.totalorder %s27, 0
      %p185 = por %p183, %p184
      %p186 = scmp.le.s32.totalorder 1, %s21
      %p187 = scmp.lt.s32.totalorder %s21, 3
      %p188 = pnand %p186, %p187
      %p189 = pneg %p188
      // Predicated region
      $region9: #{tpu_custom_call.1} parent=5 // pred_check
        _
      $region10: #{tpu_custom_call.1} parent=5 // pred_check_branch
        %191 = sbr.rel (%p188) target = $region12
      $region11: #{tpu_custom_call.1} parent=5 // pred_region
        %s192 = ssub.s32 %s21, 1
        // Predicated region
        $region13: #{tpu_custom_call.1} parent=11 // pred_check
          %p193 = pneg %p68
        $region14: #{tpu_custom_call.1} parent=11 // pred_check_branch
          %195 = sbr.rel (%p193) target = $region16
        $region15: #{tpu_custom_call.1} parent=11 // pred_region
          %s197 = ssub.s32 2048, 2048
          %198 = vsyncadd [#allocation7], %s197
          %s199 = sshll.u32 [#allocation6], 4
          %s200 = int_to_ptr.vmem [resolvable:$true] %s199
          %205 = dma.hbm_to_vmem [thread:$0]  %s1, 2048, %s200, [#allocation7], 64, 64, 4
        $region16: #{tpu_custom_call.1} parent=11 // pred_fallthru
          _
        // Predicated region
        $region17: #{tpu_custom_call.1} parent=11 // pred_check
          %p206 = pneg %p89
        $region18: #{tpu_custom_call.1} parent=11 // pred_check_branch
          %208 = sbr.rel (%p206) target = $region20
        $region19: #{tpu_custom_call.1} parent=11 // pred_region
          %s210 = ssub.s32 4096, 4096
          %211 = vsyncadd [#allocation7], %s210
          %s212 = sshll.u32 [#allocation8], 4
          %s213 = int_to_ptr.vmem [resolvable:$true] %s212
          %218 = dma.hbm_to_vmem [thread:$0]  %s2, 4096, %s213, [#allocation7], 128, 128, 8
        $region20: #{tpu_custom_call.1} parent=11 // pred_fallthru
          _
        // Predicated region
        $region21: #{tpu_custom_call.1} parent=11 // pred_check
          %p219 = pneg %p110
        $region22: #{tpu_custom_call.1} parent=11 // pred_check_branch
          %221 = sbr.rel (%p219) target = $region24
        $region23: #{tpu_custom_call.1} parent=11 // pred_region
          %s223 = ssub.s32 2048, 2048
          %224 = vsyncadd [#allocation10], %s223
          %s225 = sshll.u32 [#allocation9], 4
          %s226 = int_to_ptr.vmem [resolvable:$true] %s225
          %231 = dma.hbm_to_vmem [thread:$0]  %s3, 2048, %s226, [#allocation10], 128, 128, 8
        $region24: #{tpu_custom_call.1} parent=11 // pred_fallthru
          _
        // Predicated region
        $region25: #{tpu_custom_call.1} parent=11 // pred_check
          %p232 = pneg %p131
        $region26: #{tpu_custom_call.1} parent=11 // pred_check_branch
          %234 = sbr.rel (%p232) target = $region28
        $region27: #{tpu_custom_call.1} parent=11 // pred_region
          %s236 = ssub.s32 256, 256
          %237 = vsyncadd [#allocation10], %s236
          %s238 = sshll.u32 [#allocation11], 4
          %s239 = int_to_ptr.vmem [resolvable:$true] %s238
          %244 = dma.hbm_to_vmem [thread:$0]  %s4, 256, %s239, [#allocation10], 64, 64, 4
        $region28: #{tpu_custom_call.1} parent=11 // pred_fallthru
          _
        // Predicated region
        $region29: #{tpu_custom_call.1} parent=11 // pred_check
          %p245 = pneg %p152
        $region30: #{tpu_custom_call.1} parent=11 // pred_check_branch
          %247 = sbr.rel (%p245) target = $region32
        $region31: #{tpu_custom_call.1} parent=11 // pred_region
          %s249 = ssub.s32 512, 512
          %250 = vsyncadd [#allocation13], %s249
          %s251 = sshll.u32 [#allocation12], 4
          %s252 = int_to_ptr.vmem [resolvable:$true] %s251
          %257 = dma.hbm_to_vmem [thread:$0]  %s5, 512, %s252, [#allocation13], 128, 128, 8
        $region32: #{tpu_custom_call.1} parent=11 // pred_fallthru
          _
      $region12: #{tpu_custom_call.1} parent=5 // pred_fallthru
        _
      %p258 = scmp.lt.s32.totalorder %s21, 2
      // Predicated region
      $region33: #{tpu_custom_call.1} parent=5 // pred_check
        %p259 = pneg %p258
      $region34: #{tpu_custom_call.1} parent=5 // pred_check_branch
        %261 = sbr.rel (%p259) target = $region36
      $region35: #{tpu_custom_call.1} parent=5 // pred_region
        // Predicated region
        $region37: #{tpu_custom_call.1} parent=35 // pred_check
          %p262 = pneg %p41
        $region38: #{tpu_custom_call.1} parent=35 // pred_check_branch
          %264 = sbr.rel (%p262) target = $region40
        $region39: #{tpu_custom_call.1} parent=35 // pred_region
          %s265 = sand.u32 %s31, 1
          %s266 = scalar_lea.sflag [#allocation4], %s265
          %s267 = sand.u32 %s31, 1
          %s268 = smul.addr %s267, 32
          %s269 = scalar_lea.vmem [#allocation3], %s268
          %s271 = ssub.s32 512, 512
          %272 = vsyncadd %s266, %s271
          %s273 = smul.addr %s21, 8
          %s274 = smul.addr %s273, 64
          %s275 = scalar_lea.hbm %s0, %s274
          %s276 = sshll.u32 %s269, 4
          %s277 = int_to_ptr.vmem [resolvable:$true] %s276
          %282 = dma.hbm_to_vmem [thread:$0]  %s275, 512, %s277, %s266, 128, 128, 8
        $region40: #{tpu_custom_call.1} parent=35 // pred_fallthru
          _
      $region36: #{tpu_custom_call.1} parent=5 // pred_fallthru
        _
      %p283 = scmp.le.s32.totalorder 1, %s21
      %p284 = scmp.lt.s32.totalorder %s21, 3
      %p285 = pnand %p283, %p284
      %p286 = pneg %p285
      // Predicated region
      $region41: #{tpu_custom_call.1} parent=5 // pred_check
        _
      $region42: #{tpu_custom_call.1} parent=5 // pred_check_branch
        %288 = sbr.rel (%p285) target = $region44
      $region43: #{tpu_custom_call.1} parent=5 // pred_region
        %s289 = ssub.s32 %s21, 1
        %s290 = sand.u32 %s34, 1
        %s291 = scalar_lea.sflag [#allocation4], %s290
        %s292 = sand.u32 %s34, 1
        %s293 = smul.addr %s292, 32
        %s294 = scalar_lea.vmem [#allocation3], %s293
        // Predicated region
        $region45: #{tpu_custom_call.1} parent=43 // pred_check
          %p295 = pneg %p47
        $region46: #{tpu_custom_call.1} parent=43 // pred_check_branch
          %297 = sbr.rel (%p295) target = $region48
        $region47: #{tpu_custom_call.1} parent=43 // pred_region
          %298 = dma.done %s291, 512
        $region48: #{tpu_custom_call.1} parent=43 // pred_fallthru
          _
        // Predicated region
        $region49: #{tpu_custom_call.1} parent=43 // pred_check
          %p299 = pneg %p68
        $region50: #{tpu_custom_call.1} parent=43 // pred_check_branch
          %301 = sbr.rel (%p299) target = $region52
        $region51: #{tpu_custom_call.1} parent=43 // pred_region
          %302 = dma.done [#allocation7], 2048
        $region52: #{tpu_custom_call.1} parent=43 // pred_fallthru
          _
        // Predicated region
        $region53: #{tpu_custom_call.1} parent=43 // pred_check
          %p303 = pneg %p89
        $region54: #{tpu_custom_call.1} parent=43 // pred_check_branch
          %305 = sbr.rel (%p303) target = $region56
        $region55: #{tpu_custom_call.1} parent=43 // pred_region
          %306 = dma.done [#allocation7], 4096
        $region56: #{tpu_custom_call.1} parent=43 // pred_fallthru
          _
        // Predicated region
        $region57: #{tpu_custom_call.1} parent=43 // pred_check
          %p307 = pneg %p110
        $region58: #{tpu_custom_call.1} parent=43 // pred_check_branch
          %309 = sbr.rel (%p307) target = $region60
        $region59: #{tpu_custom_call.1} parent=43 // pred_region
          %310 = dma.done [#allocation10], 2048
        $region60: #{tpu_custom_call.1} parent=43 // pred_fallthru
          _
        // Predicated region
        $region61: #{tpu_custom_call.1} parent=43 // pred_check
          %p311 = pneg %p131
        $region62: #{tpu_custom_call.1} parent=43 // pred_check_branch
          %313 = sbr.rel (%p311) target = $region64
        $region63: #{tpu_custom_call.1} parent=43 // pred_region
          %314 = dma.done [#allocation10], 256
        $region64: #{tpu_custom_call.1} parent=43 // pred_fallthru
          _
        // Predicated region
        $region65: #{tpu_custom_call.1} parent=43 // pred_check
          %p315 = pneg %p152
        $region66: #{tpu_custom_call.1} parent=43 // pred_check_branch
          %317 = sbr.rel (%p315) target = $region68
        $region67: #{tpu_custom_call.1} parent=43 // pred_region
          %318 = dma.done [#allocation13], 512
        $region68: #{tpu_custom_call.1} parent=43 // pred_fallthru
          _
        %s319 = sand.u32 %s34, 1
        %s320 = scalar_lea.sflag [#allocation4], %s319
        %s321 = sand.u32 %s34, 1
        %s322 = smul.addr %s321, 32
        %s323 = scalar_lea.vmem [#allocation3], %s322
        %p324 = pneg %p47
        %p325 = pneg %p44
        %p326 = pneg %p68
        %p327 = pneg %p65
        %p328 = pneg %p89
        %p329 = pneg %p86
        %p330 = pneg %p110
        %p331 = pneg %p107
        %p332 = pneg %p131
        %p333 = pneg %p128
        %p334 = pneg %p152
        %p335 = pneg %p149
        %p336 = pneg %p178
        %p337 = pneg %p175
        %s338 = sand.u32 %s165, 1
        %s339 = scalar_lea.sflag [#allocation5], %s338
        %s340 = sand.u32 %s165, 1
        %s341 = smul.addr %s340, 32
        %s342 = scalar_lea.vmem [#allocation14], %s341
        %v344 = vld [vmem:[%s294] sm:$0xff]
        %v345 = vld [vmem:[%s294 + $0x8] sm:$0xff]
        %v346 = vld [vmem:[%s294 + $0x10] sm:$0xff]
        %v347 = vld [vmem:[%s294 + $0x18] sm:$0xff]
        %v348 = vld [vmem:[#allocation6] sm:$0xf]
        %v349 = vld [vmem:[#allocation6 + $0x4] sm:$0xf]
        %v350 = vld [vmem:[#allocation6 + $0x8] sm:$0xf]
        %v351 = vld [vmem:[#allocation6 + $0xc] sm:$0xf]
        %v352 = vld [vmem:[#allocation6 + $0x10] sm:$0xf]
        %v353 = vld [vmem:[#allocation6 + $0x14] sm:$0xf]
        %v354 = vld [vmem:[#allocation6 + $0x18] sm:$0xf]
        %v355 = vld [vmem:[#allocation6 + $0x1c] sm:$0xf]
        %v356 = vld [vmem:[#allocation6 + $0x20] sm:$0xf]
        %v357 = vld [vmem:[#allocation6 + $0x24] sm:$0xf]
        %v358 = vld [vmem:[#allocation6 + $0x28] sm:$0xf]
        %v359 = vld [vmem:[#allocation6 + $0x2c] sm:$0xf]
        %v360 = vld [vmem:[#allocation6 + $0x30] sm:$0xf]
        %v361 = vld [vmem:[#allocation6 + $0x34] sm:$0xf]
        %v362 = vld [vmem:[#allocation6 + $0x38] sm:$0xf]
        %v363 = vld [vmem:[#allocation6 + $0x3c] sm:$0xf]
        %v364 = vld [vmem:[#allocation6 + $0x40] sm:$0xf]
        %v365 = vld [vmem:[#allocation6 + $0x44] sm:$0xf]
        %v366 = vld [vmem:[#allocation6 + $0x48] sm:$0xf]
        %v367 = vld [vmem:[#allocation6 + $0x4c] sm:$0xf]
        %v368 = vld [vmem:[#allocation6 + $0x50] sm:$0xf]
        %v369 = vld [vmem:[#allocation6 + $0x54] sm:$0xf]
        %v370 = vld [vmem:[#allocation6 + $0x58] sm:$0xf]
        %v371 = vld [vmem:[#allocation6 + $0x5c] sm:$0xf]
        %v372 = vld [vmem:[#allocation6 + $0x60] sm:$0xf]
        %v373 = vld [vmem:[#allocation6 + $0x64] sm:$0xf]
        %v374 = vld [vmem:[#allocation6 + $0x68] sm:$0xf]
        %v375 = vld [vmem:[#allocation6 + $0x6c] sm:$0xf]
        %v376 = vld [vmem:[#allocation6 + $0x70] sm:$0xf]
        %v377 = vld [vmem:[#allocation6 + $0x74] sm:$0xf]
        %v378 = vld [vmem:[#allocation6 + $0x78] sm:$0xf]
        %v379 = vld [vmem:[#allocation6 + $0x7c] sm:$0xf]
        %v380 = vld [vmem:[#allocation8] sm:$0xff]
        %v381 = vld [vmem:[#allocation8 + $0x8] sm:$0xff]
        %v382 = vld [vmem:[#allocation8 + $0x10] sm:$0xff]
        %v383 = vld [vmem:[#allocation8 + $0x18] sm:$0xff]
        %v384 = vld [vmem:[#allocation8 + $0x20] sm:$0xff]
        %v385 = vld [vmem:[#allocation8 + $0x28] sm:$0xff]
        %v386 = vld [vmem:[#allocation8 + $0x30] sm:$0xff]
        %v387 = vld [vmem:[#allocation8 + $0x38] sm:$0xff]
        %v388 = vld [vmem:[#allocation8 + $0x40] sm:$0xff]
        %v389 = vld [vmem:[#allocation8 + $0x48] sm:$0xff]
        %v390 = vld [vmem:[#allocation8 + $0x50] sm:$0xff]
        %v391 = vld [vmem:[#allocation8 + $0x58] sm:$0xff]
        %v392 = vld [vmem:[#allocation8 + $0x60] sm:$0xff]
        %v393 = vld [vmem:[#allocation8 + $0x68] sm:$0xff]
        %v394 = vld [vmem:[#allocation8 + $0x70] sm:$0xff]
        %v395 = vld [vmem:[#allocation8 + $0x78] sm:$0xff]
        %v396 = vld [vmem:[#allocation8 + $0x80] sm:$0xff]
        %v397 = vld [vmem:[#allocation8 + $0x88] sm:$0xff]
        %v398 = vld [vmem:[#allocation8 + $0x90] sm:$0xff]
        %v399 = vld [vmem:[#allocation8 + $0x98] sm:$0xff]
        %v400 = vld [vmem:[#allocation8 + $0xa0] sm:$0xff]
        %v401 = vld [vmem:[#allocation8 + $0xa8] sm:$0xff]
        %v402 = vld [vmem:[#allocation8 + $0xb0] sm:$0xff]
        %v403 = vld [vmem:[#allocation8 + $0xb8] sm:$0xff]
        %v404 = vld [vmem:[#allocation8 + $0xc0] sm:$0xff]
        %v405 = vld [vmem:[#allocation8 + $0xc8] sm:$0xff]
        %v406 = vld [vmem:[#allocation8 + $0xd0] sm:$0xff]
        %v407 = vld [vmem:[#allocation8 + $0xd8] sm:$0xff]
        %v408 = vld [vmem:[#allocation8 + $0xe0] sm:$0xff]
        %v409 = vld [vmem:[#allocation8 + $0xe8] sm:$0xff]
        %v410 = vld [vmem:[#allocation8 + $0xf0] sm:$0xff]
        %v411 = vld [vmem:[#allocation8 + $0xf8] sm:$0xff]
        %413 = vset.pattern.permute.xlu0 0
        %414 = vperm.xlu0 %413, %v380
        %v415 = vpop.permute.xlu0 %414
        %418 = vset.pattern.permute.xlu0 0
        %419 = vperm.xlu0 %418, %v381
        %v420 = vpop.permute.xlu0 %419
        %423 = vset.pattern.permute.xlu0 0
        %424 = vperm.xlu0 %423, %v382
        %v425 = vpop.permute.xlu0 %424
        %428 = vset.pattern.permute.xlu0 0
        %429 = vperm.xlu0 %428, %v383
        %v430 = vpop.permute.xlu0 %429
        %433 = vset.pattern.permute.xlu0 0
        %434 = vperm.xlu0 %433, %v384
        %v435 = vpop.permute.xlu0 %434
        %438 = vset.pattern.permute.xlu0 0
        %439 = vperm.xlu0 %438, %v385
        %v440 = vpop.permute.xlu0 %439
        %443 = vset.pattern.permute.xlu0 0
        %444 = vperm.xlu0 %443, %v386
        %v445 = vpop.permute.xlu0 %444
        %448 = vset.pattern.permute.xlu0 0
        %449 = vperm.xlu0 %448, %v387
        %v450 = vpop.permute.xlu0 %449
        %453 = vset.pattern.permute.xlu0 0
        %454 = vperm.xlu0 %453, %v388
        %v455 = vpop.permute.xlu0 %454
        %458 = vset.pattern.permute.xlu0 0
        %459 = vperm.xlu0 %458, %v389
        %v460 = vpop.permute.xlu0 %459
        %463 = vset.pattern.permute.xlu0 0
        %464 = vperm.xlu0 %463, %v390
        %v465 = vpop.permute.xlu0 %464
        %468 = vset.pattern.permute.xlu0 0
        %469 = vperm.xlu0 %468, %v391
        %v470 = vpop.permute.xlu0 %469
        %473 = vset.pattern.permute.xlu0 0
        %474 = vperm.xlu0 %473, %v392
        %v475 = vpop.permute.xlu0 %474
        %478 = vset.pattern.permute.xlu0 0
        %479 = vperm.xlu0 %478, %v393
        %v480 = vpop.permute.xlu0 %479
        %483 = vset.pattern.permute.xlu0 0
        %484 = vperm.xlu0 %483, %v394
        %v485 = vpop.permute.xlu0 %484
        %488 = vset.pattern.permute.xlu0 0
        %489 = vperm.xlu0 %488, %v395
        %v490 = vpop.permute.xlu0 %489
        %493 = vset.pattern.permute.xlu0 0
        %494 = vperm.xlu0 %493, %v396
        %v495 = vpop.permute.xlu0 %494
        %498 = vset.pattern.permute.xlu0 0
        %499 = vperm.xlu0 %498, %v397
        %v500 = vpop.permute.xlu0 %499
        %503 = vset.pattern.permute.xlu0 0
        %504 = vperm.xlu0 %503, %v398
        %v505 = vpop.permute.xlu0 %504
        %508 = vset.pattern.permute.xlu0 0
        %509 = vperm.xlu0 %508, %v399
        %v510 = vpop.permute.xlu0 %509
        %513 = vset.pattern.permute.xlu0 0
        %514 = vperm.xlu0 %513, %v400
        %v515 = vpop.permute.xlu0 %514
        %518 = vset.pattern.permute.xlu0 0
        %519 = vperm.xlu0 %518, %v401
        %v520 = vpop.permute.xlu0 %519
        %523 = vset.pattern.permute.xlu0 0
        %524 = vperm.xlu0 %523, %v402
        %v525 = vpop.permute.xlu0 %524
        %528 = vset.pattern.permute.xlu0 0
        %529 = vperm.xlu0 %528, %v403
        %v530 = vpop.permute.xlu0 %529
        %533 = vset.pattern.permute.xlu0 0
        %534 = vperm.xlu0 %533, %v404
        %v535 = vpop.permute.xlu0 %534
        %538 = vset.pattern.permute.xlu0 0
        %539 = vperm.xlu0 %538, %v405
        %v540 = vpop.permute.xlu0 %539
        %543 = vset.pattern.permute.xlu0 0
        %544 = vperm.xlu0 %543, %v406
        %v545 = vpop.permute.xlu0 %544
        %548 = vset.pattern.permute.xlu0 0
        %549 = vperm.xlu0 %548, %v407
        %v550 = vpop.permute.xlu0 %549
        %553 = vset.pattern.permute.xlu0 0
        %554 = vperm.xlu0 %553, %v408
        %v555 = vpop.permute.xlu0 %554
        %558 = vset.pattern.permute.xlu0 0
        %559 = vperm.xlu0 %558, %v409
        %v560 = vpop.permute.xlu0 %559
        %563 = vset.pattern.permute.xlu0 0
        %564 = vperm.xlu0 %563, %v410
        %v565 = vpop.permute.xlu0 %564
        %568 = vset.pattern.permute.xlu0 0
        %569 = vperm.xlu0 %568, %v411
        %v570 = vpop.permute.xlu0 %569
        %v604 = vunpack.c.l.b16 %v348
        %v605 = vunpack.c.l.b16 %v349
        %v606 = vunpack.c.l.b16 %v350
        %v607 = vunpack.c.l.b16 %v351
        %v608 = vunpack.c.l.b16 %v352
        %v609 = vunpack.c.l.b16 %v353
        %v610 = vunpack.c.l.b16 %v354
        %v611 = vunpack.c.l.b16 %v355
        %v612 = vunpack.c.l.b16 %v356
        %v613 = vunpack.c.l.b16 %v357
        %v614 = vunpack.c.l.b16 %v358
        %v615 = vunpack.c.l.b16 %v359
        %v616 = vunpack.c.l.b16 %v360
        %v617 = vunpack.c.l.b16 %v361
        %v618 = vunpack.c.l.b16 %v362
        %v619 = vunpack.c.l.b16 %v363
        %v620 = vunpack.c.l.b16 %v364
        %v621 = vunpack.c.l.b16 %v365
        %v622 = vunpack.c.l.b16 %v366
        %v623 = vunpack.c.l.b16 %v367
        %v624 = vunpack.c.l.b16 %v368
        %v625 = vunpack.c.l.b16 %v369
        %v626 = vunpack.c.l.b16 %v370
        %v627 = vunpack.c.l.b16 %v371
        %v628 = vunpack.c.l.b16 %v372
        %v629 = vunpack.c.l.b16 %v373
        %v630 = vunpack.c.l.b16 %v374
        %v631 = vunpack.c.l.b16 %v375
        %v632 = vunpack.c.l.b16 %v376
        %v633 = vunpack.c.l.b16 %v377
        %v634 = vunpack.c.l.b16 %v378
        %v635 = vunpack.c.l.b16 %v379
        %v636 = vpack.c.b16 %v605, %v604
        %v637 = vpack.c.b16 %v607, %v606
        %v638 = vpack.c.b16 %v609, %v608
        %v639 = vpack.c.b16 %v611, %v610
        %v640 = vpack.c.b16 %v613, %v612
        %v641 = vpack.c.b16 %v615, %v614
        %v642 = vpack.c.b16 %v617, %v616
        %v643 = vpack.c.b16 %v619, %v618
        %v644 = vpack.c.b16 %v621, %v620
        %v645 = vpack.c.b16 %v623, %v622
        %v646 = vpack.c.b16 %v625, %v624
        %v647 = vpack.c.b16 %v627, %v626
        %v648 = vpack.c.b16 %v629, %v628
        %v649 = vpack.c.b16 %v631, %v630
        %v650 = vpack.c.b16 %v633, %v632
        %v651 = vpack.c.b16 %v635, %v634
        %v656 = vunpack.c.l.b16 %v344
        %v657 = vunpack.c.h.b16 %v344
        %v658 = vunpack.c.l.b16 %v345
        %v659 = vunpack.c.h.b16 %v345
        %v660 = vunpack.c.l.b16 %v346
        %v661 = vunpack.c.h.b16 %v346
        %v662 = vunpack.c.l.b16 %v347
        %v663 = vunpack.c.h.b16 %v347
        %v664 = vpack.c.b16 %v658, %v656
        %v665 = vpack.c.b16 %v659, %v657
        %v666 = vpack.c.b16 %v662, %v660
        %v667 = vpack.c.b16 %v663, %v661
        %vm672 = vcmask 261120
        %v674 = vsel %vm672, %v636, 0
        %v677 = vsel %vm672, %v637, 0
        %v680 = vsel %vm672, %v638, 0
        %v683 = vsel %vm672, %v639, 0
        %v686 = vsel %vm672, %v640, 0
        %v689 = vsel %vm672, %v641, 0
        %v692 = vsel %vm672, %v642, 0
        %v695 = vsel %vm672, %v643, 0
        %v698 = vsel %vm672, %v644, 0
        %v701 = vsel %vm672, %v645, 0
        %v704 = vsel %vm672, %v646, 0
        %v707 = vsel %vm672, %v647, 0
        %v710 = vsel %vm672, %v648, 0
        %v713 = vsel %vm672, %v649, 0
        %v716 = vsel %vm672, %v650, 0
        %v719 = vsel %vm672, %v651, 0
        %721 = vmatprep.subr.bf16.mxu0 %v665
        %722 = vmatpush1.bf16.msra.mxu0 %v664
        %723 = vmatprep.subr.bf16.mxu0 %v667
        %724 = vmatpush1.bf16.msra.mxu0 %v666
        %725 = vmatprep.subr.bf16.mxu0 0
        %726 = vmatpush1.bf16.msra.mxu0 0
        %727 = vmatprep.subr.bf16.mxu0 0
        %728 = vmatpush1.bf16.msra.mxu0 0
        %729 = vmatprep.subr.bf16.mxu0 0
        %730 = vmatpush1.bf16.msra.mxu0 0
        %731 = vmatprep.subr.bf16.mxu0 0
        %732 = vmatpush1.bf16.msra.mxu0 0
        %733 = vmatprep.subr.bf16.mxu0 0
        %734 = vmatpush1.bf16.msra.mxu0 0
        %735 = vmatprep.subr.bf16.mxu0 0
        %736 = vmatpush1.bf16.msra.mxu0 0
        %737 = vmatprep.subr.bf16.mxu0 0
        %738 = vmatpush1.bf16.msra.mxu0 0
        %739 = vmatprep.subr.bf16.mxu0 0
        %740 = vmatpush1.bf16.msra.mxu0 0
        %741 = vmatprep.subr.bf16.mxu0 0
        %742 = vmatpush1.bf16.msra.mxu0 0
        %743 = vmatprep.subr.bf16.mxu0 0
        %744 = vmatpush1.bf16.msra.mxu0 0
        %745 = vmatprep.subr.bf16.mxu0 0
        %746 = vmatpush1.bf16.msra.mxu0 0
        %747 = vmatprep.subr.bf16.mxu0 0
        %748 = vmatpush1.bf16.msra.mxu0 0
        %749 = vmatprep.subr.bf16.mxu0 0
        %750 = vmatpush1.bf16.msra.mxu0 0
        %751 = vmatprep.subr.bf16.mxu0 0
        %752 = vmatpush1.bf16.msra.mxu0 0
        %753 = vmatprep.mubr.bf16.mxu0 0
        %754 = vmatmul.mubr.bf16.gmra.mrb[0].mxu0 %v674
        %v755 = vpop.f32.mrb[0].mxu0
        %v756 = vadd.f32 %v415, %v755
        %v757 = vpop.f32.mrb[0].mxu0
        %v758 = vadd.f32 %v415, %v757
        %v759 = vpop.f32.mrb[0].mxu0
        %v760 = vadd.f32 %v420, %v759
        %v761 = vpop.f32.mrb[0].mxu0
        %v762 = vadd.f32 %v420, %v761
        %763 = vmatprep.mubr.bf16.mxu0 0
        %764 = vmatmul.mubr.bf16.gmra.mrb[0].mxu0 %v677
        %v765 = vpop.f32.mrb[0].mxu0
        %v766 = vadd.f32 %v425, %v765
        %v767 = vpop.f32.mrb[0].mxu0
        %v768 = vadd.f32 %v425, %v767
        %v769 = vpop.f32.mrb[0].mxu0
        %v770 = vadd.f32 %v430, %v769
        %v771 = vpop.f32.mrb[0].mxu0
        %v772 = vadd.f32 %v430, %v771
        %773 = vmatprep.mubr.bf16.mxu0 0
        %774 = vmatmul.mubr.bf16.gmra.mrb[0].mxu0 %v680
        %v775 = vpop.f32.mrb[0].mxu0
        %v776 = vadd.f32 %v435, %v775
        %v777 = vpop.f32.mrb[0].mxu0
        %v778 = vadd.f32 %v435, %v777
        %v779 = vpop.f32.mrb[0].mxu0
        %v780 = vadd.f32 %v440, %v779
        %v781 = vpop.f32.mrb[0].mxu0
        %v782 = vadd.f32 %v440, %v781
        %783 = vmatprep.mubr.bf16.mxu0 0
        %784 = vmatmul.mubr.bf16.gmra.mrb[0].mxu0 %v683
        %v785 = vpop.f32.mrb[0].mxu0
        %v786 = vadd.f32 %v445, %v785
        %v787 = vpop.f32.mrb[0].mxu0
        %v788 = vadd.f32 %v445, %v787
        %v789 = vpop.f32.mrb[0].mxu0
        %v790 = vadd.f32 %v450, %v789
        %v791 = vpop.f32.mrb[0].mxu0
        %v792 = vadd.f32 %v450, %v791
        %793 = vmatprep.mubr.bf16.mxu0 0
        %794 = vmatmul.mubr.bf16.gmra.mrb[0].mxu0 %v686
        %v795 = vpop.f32.mrb[0].mxu0
        %v796 = vadd.f32 %v455, %v795
        %v797 = vpop.f32.mrb[0].mxu0
        %v798 = vadd.f32 %v455, %v797
        %v799 = vpop.f32.mrb[0].mxu0
        %v800 = vadd.f32 %v460, %v799
        %v801 = vpop.f32.mrb[0].mxu0
        %v802 = vadd.f32 %v460, %v801
        %803 = vmatprep.mubr.bf16.mxu0 0
        %804 = vmatmul.mubr.bf16.gmra.mrb[0].mxu0 %v689
        %v805 = vpop.f32.mrb[0].mxu0
        %v806 = vadd.f32 %v465, %v805
        %v807 = vpop.f32.mrb[0].mxu0
        %v808 = vadd.f32 %v465, %v807
        %v809 = vpop.f32.mrb[0].mxu0
        %v810 = vadd.f32 %v470, %v809
        %v811 = vpop.f32.mrb[0].mxu0
        %v812 = vadd.f32 %v470, %v811
        %813 = vmatprep.mubr.bf16.mxu0 0
        %814 = vmatmul.mubr.bf16.gmra.mrb[0].mxu0 %v692
        %v815 = vpop.f32.mrb[0].mxu0
        %v816 = vadd.f32 %v475, %v815
        %v817 = vpop.f32.mrb[0].mxu0
        %v818 = vadd.f32 %v475, %v817
        %v819 = vpop.f32.mrb[0].mxu0
        %v820 = vadd.f32 %v480, %v819
        %v821 = vpop.f32.mrb[0].mxu0
        %v822 = vadd.f32 %v480, %v821
        %823 = vmatprep.mubr.bf16.mxu0 0
        %824 = vmatmul.mubr.bf16.gmra.mrb[0].mxu0 %v695
        %v825 = vpop.f32.mrb[0].mxu0
        %v826 = vadd.f32 %v485, %v825
        %v827 = vpop.f32.mrb[0].mxu0
        %v828 = vadd.f32 %v485, %v827
        %v829 = vpop.f32.mrb[0].mxu0
        %v830 = vadd.f32 %v490, %v829
        %v831 = vpop.f32.mrb[0].mxu0
        %v832 = vadd.f32 %v490, %v831
        %833 = vmatprep.mubr.bf16.mxu0 0
        %834 = vmatmul.mubr.bf16.gmra.mrb[0].mxu0 %v698
        %v835 = vpop.f32.mrb[0].mxu0
        %v836 = vadd.f32 %v495, %v835
        %v837 = vpop.f32.mrb[0].mxu0
        %v838 = vadd.f32 %v495, %v837
        %v839 = vpop.f32.mrb[0].mxu0
        %v840 = vadd.f32 %v500, %v839
        %v841 = vpop.f32.mrb[0].mxu0
        %v842 = vadd.f32 %v500, %v841
        %843 = vmatprep.mubr.bf16.mxu0 0
        %844 = vmatmul.mubr.bf16.gmra.mrb[0].mxu0 %v701
        %v845 = vpop.f32.mrb[0].mxu0
        %v846 = vadd.f32 %v505, %v845
        %v847 = vpop.f32.mrb[0].mxu0
        %v848 = vadd.f32 %v505, %v847
        %v849 = vpop.f32.mrb[0].mxu0
        %v850 = vadd.f32 %v510, %v849
        %v851 = vpop.f32.mrb[0].mxu0
        %v852 = vadd.f32 %v510, %v851
        %853 = vmatprep.mubr.bf16.mxu0 0
        %854 = vmatmul.mubr.bf16.gmra.mrb[0].mxu0 %v704
        %v855 = vpop.f32.mrb[0].mxu0
        %v856 = vadd.f32 %v515, %v855
        %v857 = vpop.f32.mrb[0].mxu0
        %v858 = vadd.f32 %v515, %v857
        %v859 = vpop.f32.mrb[0].mxu0
        %v860 = vadd.f32 %v520, %v859
        %v861 = vpop.f32.mrb[0].mxu0
        %v862 = vadd.f32 %v520, %v861
        %863 = vmatprep.mubr.bf16.mxu0 0
        %864 = vmatmul.mubr.bf16.gmra.mrb[0].mxu0 %v707
        %v865 = vpop.f32.mrb[0].mxu0
        %v866 = vadd.f32 %v525, %v865
        %v867 = vpop.f32.mrb[0].mxu0
        %v868 = vadd.f32 %v525, %v867
        %v869 = vpop.f32.mrb[0].mxu0
        %v870 = vadd.f32 %v530, %v869
        %v871 = vpop.f32.mrb[0].mxu0
        %v872 = vadd.f32 %v530, %v871
        %873 = vmatprep.mubr.bf16.mxu0 0
        %874 = vmatmul.mubr.bf16.gmra.mrb[0].mxu0 %v710
        %v875 = vpop.f32.mrb[0].mxu0
        %v876 = vadd.f32 %v535, %v875
        %v877 = vpop.f32.mrb[0].mxu0
        %v878 = vadd.f32 %v535, %v877
        %v879 = vpop.f32.mrb[0].mxu0
        %v880 = vadd.f32 %v540, %v879
        %v881 = vpop.f32.mrb[0].mxu0
        %v882 = vadd.f32 %v540, %v881
        %883 = vmatprep.mubr.bf16.mxu0 0
        %884 = vmatmul.mubr.bf16.gmra.mrb[0].mxu0 %v713
        %v885 = vpop.f32.mrb[0].mxu0
        %v886 = vadd.f32 %v545, %v885
        %v887 = vpop.f32.mrb[0].mxu0
        %v888 = vadd.f32 %v545, %v887
        %v889 = vpop.f32.mrb[0].mxu0
        %v890 = vadd.f32 %v550, %v889
        %v891 = vpop.f32.mrb[0].mxu0
        %v892 = vadd.f32 %v550, %v891
        %893 = vmatprep.mubr.bf16.mxu0 0
        %894 = vmatmul.mubr.bf16.gmra.mrb[0].mxu0 %v716
        %v895 = vpop.f32.mrb[0].mxu0
        %v896 = vadd.f32 %v555, %v895
        %v897 = vpop.f32.mrb[0].mxu0
        %v898 = vadd.f32 %v555, %v897
        %v899 = vpop.f32.mrb[0].mxu0
        %v900 = vadd.f32 %v560, %v899
        %v901 = vpop.f32.mrb[0].mxu0
        %v902 = vadd.f32 %v560, %v901
        %903 = vmatprep.mubr.bf16.mxu0 0
        %904 = vmatmul.mubr.bf16.gmra.mrb[0].mxu0 %v719
        %v905 = vpop.f32.mrb[0].mxu0
        %v906 = vadd.f32 %v565, %v905
        %v907 = vpop.f32.mrb[0].mxu0
        %v908 = vadd.f32 %v565, %v907
        %v909 = vpop.f32.mrb[0].mxu0
        %v910 = vadd.f32 %v570, %v909
        %v911 = vpop.f32.mrb[0].mxu0
        %v912 = vadd.f32 %v570, %v911
        %913 = vdwg.mxu0
        %v914 = vpack.c.bf16 %v760, %v756
        %v915 = vpack.c.bf16 %v762, %v758
        %v916 = vpack.c.bf16 %v770, %v766
        %v917 = vpack.c.bf16 %v772, %v768
        %v918 = vpack.c.bf16 %v780, %v776
        %v919 = vpack.c.bf16 %v782, %v778
        %v920 = vpack.c.bf16 %v790, %v786
        %v921 = vpack.c.bf16 %v792, %v788
        %v922 = vpack.c.bf16 %v800, %v796
        %v923 = vpack.c.bf16 %v802, %v798
        %v924 = vpack.c.bf16 %v810, %v806
        %v925 = vpack.c.bf16 %v812, %v808
        %v926 = vpack.c.bf16 %v820, %v816
        %v927 = vpack.c.bf16 %v822, %v818
        %v928 = vpack.c.bf16 %v830, %v826
        %v929 = vpack.c.bf16 %v832, %v828
        %v930 = vpack.c.bf16 %v840, %v836
        %v931 = vpack.c.bf16 %v842, %v838
        %v932 = vpack.c.bf16 %v850, %v846
        %v933 = vpack.c.bf16 %v852, %v848
        %v934 = vpack.c.bf16 %v860, %v856
        %v935 = vpack.c.bf16 %v862, %v858
        %v936 = vpack.c.bf16 %v870, %v866
        %v937 = vpack.c.bf16 %v872, %v868
        %v938 = vpack.c.bf16 %v880, %v876
        %v939 = vpack.c.bf16 %v882, %v878
        %v940 = vpack.c.bf16 %v890, %v886
        %v941 = vpack.c.bf16 %v892, %v888
        %v942 = vpack.c.bf16 %v900, %v896
        %v943 = vpack.c.bf16 %v902, %v898
        %v944 = vpack.c.bf16 %v910, %v906
        %v945 = vpack.c.bf16 %v912, %v908
        %v946 = vld [vmem:[#allocation9] sm:$0xff]
        %v947 = vld [vmem:[#allocation9 + $0x8] sm:$0xff]
        %v948 = vld [vmem:[#allocation9 + $0x10] sm:$0xff]
        %v949 = vld [vmem:[#allocation9 + $0x18] sm:$0xff]
        %v950 = vld [vmem:[#allocation9 + $0x20] sm:$0xff]
        %v951 = vld [vmem:[#allocation9 + $0x28] sm:$0xff]
        %v952 = vld [vmem:[#allocation9 + $0x30] sm:$0xff]
        %v953 = vld [vmem:[#allocation9 + $0x38] sm:$0xff]
        %v954 = vld [vmem:[#allocation9 + $0x40] sm:$0xff]
        %v955 = vld [vmem:[#allocation9 + $0x48] sm:$0xff]
        %v956 = vld [vmem:[#allocation9 + $0x50] sm:$0xff]
        %v957 = vld [vmem:[#allocation9 + $0x58] sm:$0xff]
        %v958 = vld [vmem:[#allocation9 + $0x60] sm:$0xff]
        %v959 = vld [vmem:[#allocation9 + $0x68] sm:$0xff]
        %v960 = vld [vmem:[#allocation9 + $0x70] sm:$0xff]
        %v961 = vld [vmem:[#allocation9 + $0x78] sm:$0xff]
        %v978 = vunpack.c.l.b16 %v946
        %v979 = vunpack.c.h.b16 %v946
        %v980 = vunpack.c.l.b16 %v947
        %v981 = vunpack.c.h.b16 %v947
        %v982 = vunpack.c.l.b16 %v948
        %v983 = vunpack.c.h.b16 %v948
        %v984 = vunpack.c.l.b16 %v949
        %v985 = vunpack.c.h.b16 %v949
        %v986 = vunpack.c.l.b16 %v950
        %v987 = vunpack.c.h.b16 %v950
        %v988 = vunpack.c.l.b16 %v951
        %v989 = vunpack.c.h.b16 %v951
        %v990 = vunpack.c.l.b16 %v952
        %v991 = vunpack.c.h.b16 %v952
        %v992 = vunpack.c.l.b16 %v953
        %v993 = vunpack.c.h.b16 %v953
        %v994 = vunpack.c.l.b16 %v954
        %v995 = vunpack.c.h.b16 %v954
        %v996 = vunpack.c.l.b16 %v955
        %v997 = vunpack.c.h.b16 %v955
        %v998 = vunpack.c.l.b16 %v956
        %v999 = vunpack.c.h.b16 %v956
        %v1000 = vunpack.c.l.b16 %v957
        %v1001 = vunpack.c.h.b16 %v957
        %v1002 = vunpack.c.l.b16 %v958
        %v1003 = vunpack.c.h.b16 %v958
        %v1004 = vunpack.c.l.b16 %v959
        %v1005 = vunpack.c.h.b16 %v959
        %v1006 = vunpack.c.l.b16 %v960
        %v1007 = vunpack.c.h.b16 %v960
        %v1008 = vunpack.c.l.b16 %v961
        %v1009 = vunpack.c.h.b16 %v961
        %v1010 = vpack.c.b16 %v980, %v978
        %v1011 = vpack.c.b16 %v981, %v979
        %v1012 = vpack.c.b16 %v984, %v982
        %v1013 = vpack.c.b16 %v985, %v983
        %v1014 = vpack.c.b16 %v988, %v986
        %v1015 = vpack.c.b16 %v989, %v987
        %v1016 = vpack.c.b16 %v992, %v990
        %v1017 = vpack.c.b16 %v993, %v991
        %v1018 = vpack.c.b16 %v996, %v994
        %v1019 = vpack.c.b16 %v997, %v995
        %v1020 = vpack.c.b16 %v1000, %v998
        %v1021 = vpack.c.b16 %v1001, %v999
        %v1022 = vpack.c.b16 %v1004, %v1002
        %v1023 = vpack.c.b16 %v1005, %v1003
        %v1024 = vpack.c.b16 %v1008, %v1006
        %v1025 = vpack.c.b16 %v1009, %v1007
        %1042 = vmatprep.subr.bf16.mxu0 %v915
        %1043 = vmatpush1.bf16.msra.mxu0 %v914
        %1044 = vmatprep.subr.bf16.mxu0 %v917
        %1045 = vmatpush1.bf16.msra.mxu0 %v916
        %1046 = vmatprep.subr.bf16.mxu0 %v919
        %1047 = vmatpush1.bf16.msra.mxu0 %v918
        %1048 = vmatprep.subr.bf16.mxu0 %v921
        %1049 = vmatpush1.bf16.msra.mxu0 %v920
        %1050 = vmatprep.subr.bf16.mxu0 %v923
        %1051 = vmatpush1.bf16.msra.mxu0 %v922
        %1052 = vmatprep.subr.bf16.mxu0 %v925
        %1053 = vmatpush1.bf16.msra.mxu0 %v924
        %1054 = vmatprep.subr.bf16.mxu0 %v927
        %1055 = vmatpush1.bf16.msra.mxu0 %v926
        %1056 = vmatprep.subr.bf16.mxu0 %v929
        %1057 = vmatpush1.bf16.msra.mxu0 %v928
        %1058 = vmatprep.subr.bf16.mxu0 %v931
        %1059 = vmatpush1.bf16.msra.mxu0 %v930
        %1060 = vmatprep.subr.bf16.mxu0 %v933
        %1061 = vmatpush1.bf16.msra.mxu0 %v932
        %1062 = vmatprep.subr.bf16.mxu0 %v935
        %1063 = vmatpush1.bf16.msra.mxu0 %v934
        %1064 = vmatprep.subr.bf16.mxu0 %v937
        %1065 = vmatpush1.bf16.msra.mxu0 %v936
        %1066 = vmatprep.subr.bf16.mxu0 %v939
        %1067 = vmatpush1.bf16.msra.mxu0 %v938
        %1068 = vmatprep.subr.bf16.mxu0 %v941
        %1069 = vmatpush1.bf16.msra.mxu0 %v940
        %1070 = vmatprep.subr.bf16.mxu0 %v943
        %1071 = vmatpush1.bf16.msra.mxu0 %v942
        %1072 = vmatprep.subr.bf16.mxu0 %v945
        %1073 = vmatpush1.bf16.msra.mxu0 %v944
        %1074 = vmatprep.mubr.bf16.mxu0 %v1011
        %1075 = vmatmul.mubr.bf16.gmra.mrb[0].mxu0 %v1010
        %v1076 = vpop.f32.mrb[0].mxu0
        %v1077 = vadd.f32 0.0, %v1076
        %v1078 = vpop.f32.mrb[0].mxu0
        %v1079 = vadd.f32 0.0, %v1078
        %v1080 = vpop.f32.mrb[0].mxu0
        %v1081 = vadd.f32 0.0, %v1080
        %v1082 = vpop.f32.mrb[0].mxu0
        %v1083 = vadd.f32 0.0, %v1082
        %1084 = vmatprep.mubr.bf16.mxu0 %v1013
        %1085 = vmatmul.mubr.bf16.gmra.mrb[0].mxu0 %v1012
        %v1086 = vpop.f32.mrb[0].mxu0
        %v1087 = vadd.f32 0.0, %v1086
        %v1088 = vpop.f32.mrb[0].mxu0
        %v1089 = vadd.f32 0.0, %v1088
        %v1090 = vpop.f32.mrb[0].mxu0
        %v1091 = vadd.f32 0.0, %v1090
        %v1092 = vpop.f32.mrb[0].mxu0
        %v1093 = vadd.f32 0.0, %v1092
        %1094 = vmatprep.mubr.bf16.mxu0 %v1015
        %1095 = vmatmul.mubr.bf16.gmra.mrb[0].mxu0 %v1014
        %v1096 = vpop.f32.mrb[0].mxu0
        %v1097 = vadd.f32 0.0, %v1096
        %v1098 = vpop.f32.mrb[0].mxu0
        %v1099 = vadd.f32 0.0, %v1098
        %v1100 = vpop.f32.mrb[0].mxu0
        %v1101 = vadd.f32 0.0, %v1100
        %v1102 = vpop.f32.mrb[0].mxu0
        %v1103 = vadd.f32 0.0, %v1102
        %1104 = vmatprep.mubr.bf16.mxu0 %v1017
        %1105 = vmatmul.mubr.bf16.gmra.mrb[0].mxu0 %v1016
        %v1106 = vpop.f32.mrb[0].mxu0
        %v1107 = vadd.f32 0.0, %v1106
        %v1108 = vpop.f32.mrb[0].mxu0
        %v1109 = vadd.f32 0.0, %v1108
        %v1110 = vpop.f32.mrb[0].mxu0
        %v1111 = vadd.f32 0.0, %v1110
        %v1112 = vpop.f32.mrb[0].mxu0
        %v1113 = vadd.f32 0.0, %v1112
        %1114 = vmatprep.mubr.bf16.mxu0 %v1019
        %1115 = vmatmul.mubr.bf16.gmra.mrb[0].mxu0 %v1018
        %v1116 = vpop.f32.mrb[0].mxu0
        %v1117 = vadd.f32 0.0, %v1116
        %v1118 = vpop.f32.mrb[0].mxu0
        %v1119 = vadd.f32 0.0, %v1118
        %v1120 = vpop.f32.mrb[0].mxu0
        %v1121 = vadd.f32 0.0, %v1120
        %v1122 = vpop.f32.mrb[0].mxu0
        %v1123 = vadd.f32 0.0, %v1122
        %1124 = vmatprep.mubr.bf16.mxu0 %v1021
        %1125 = vmatmul.mubr.bf16.gmra.mrb[0].mxu0 %v1020
        %v1126 = vpop.f32.mrb[0].mxu0
        %v1127 = vadd.f32 0.0, %v1126
        %v1128 = vpop.f32.mrb[0].mxu0
        %v1129 = vadd.f32 0.0, %v1128
        %v1130 = vpop.f32.mrb[0].mxu0
        %v1131 = vadd.f32 0.0, %v1130
        %v1132 = vpop.f32.mrb[0].mxu0
        %v1133 = vadd.f32 0.0, %v1132
        %1134 = vmatprep.mubr.bf16.mxu0 %v1023
        %1135 = vmatmul.mubr.bf16.gmra.mrb[0].mxu0 %v1022
        %v1136 = vpop.f32.mrb[0].mxu0
        %v1137 = vadd.f32 0.0, %v1136
        %v1138 = vpop.f32.mrb[0].mxu0
        %v1139 = vadd.f32 0.0, %v1138
        %v1140 = vpop.f32.mrb[0].mxu0
        %v1141 = vadd.f32 0.0, %v1140
        %v1142 = vpop.f32.mrb[0].mxu0
        %v1143 = vadd.f32 0.0, %v1142
        %1144 = vmatprep.mubr.bf16.mxu0 %v1025
        %1145 = vmatmul.mubr.bf16.gmra.mrb[0].mxu0 %v1024
        %v1146 = vpop.f32.mrb[0].mxu0
        %v1147 = vadd.f32 0.0, %v1146
        %v1148 = vpop.f32.mrb[0].mxu0
        %v1149 = vadd.f32 0.0, %v1148
        %v1150 = vpop.f32.mrb[0].mxu0
        %v1151 = vadd.f32 0.0, %v1150
        %v1152 = vpop.f32.mrb[0].mxu0
        %v1153 = vadd.f32 0.0, %v1152
        %1154 = vdwg.mxu0
        %v1155 = vmax.f32 %v1077, %v1079
        %1156 = vmax.xlane.f32.xlu0 %v1155
        %v1157 = vpop.xlane.xlu0 %1156
        %v1158 = vmax.f32 %v1081, %v1083
        %1159 = vmax.xlane.f32.xlu0 %v1158
        %v1160 = vpop.xlane.xlu0 %1159
        %v1161 = vmax.f32 %v1087, %v1089
        %1162 = vmax.xlane.f32.xlu0 %v1161
        %v1163 = vpop.xlane.xlu0 %1162
        %v1164 = vmax.f32 %v1091, %v1093
        %1165 = vmax.xlane.f32.xlu0 %v1164
        %v1166 = vpop.xlane.xlu0 %1165
        %v1167 = vmax.f32 %v1097, %v1099
        %1168 = vmax.xlane.f32.xlu0 %v1167
        %v1169 = vpop.xlane.xlu0 %1168
        %v1170 = vmax.f32 %v1101, %v1103
        %1171 = vmax.xlane.f32.xlu0 %v1170
        %v1172 = vpop.xlane.xlu0 %1171
        %v1173 = vmax.f32 %v1107, %v1109
        %1174 = vmax.xlane.f32.xlu0 %v1173
        %v1175 = vpop.xlane.xlu0 %1174
        %v1176 = vmax.f32 %v1111, %v1113
        %1177 = vmax.xlane.f32.xlu0 %v1176
        %v1178 = vpop.xlane.xlu0 %1177
        %v1179 = vmax.f32 %v1117, %v1119
        %1180 = vmax.xlane.f32.xlu0 %v1179
        %v1181 = vpop.xlane.xlu0 %1180
        %v1182 = vmax.f32 %v1121, %v1123
        %1183 = vmax.xlane.f32.xlu0 %v1182
        %v1184 = vpop.xlane.xlu0 %1183
        %v1185 = vmax.f32 %v1127, %v1129
        %1186 = vmax.xlane.f32.xlu0 %v1185
        %v1187 = vpop.xlane.xlu0 %1186
        %v1188 = vmax.f32 %v1131, %v1133
        %1189 = vmax.xlane.f32.xlu0 %v1188
        %v1190 = vpop.xlane.xlu0 %1189
        %v1191 = vmax.f32 %v1137, %v1139
        %1192 = vmax.xlane.f32.xlu0 %v1191
        %v1193 = vpop.xlane.xlu0 %1192
        %v1194 = vmax.f32 %v1141, %v1143
        %1195 = vmax.xlane.f32.xlu0 %v1194
        %v1196 = vpop.xlane.xlu0 %1195
        %v1197 = vmax.f32 %v1147, %v1149
        %1198 = vmax.xlane.f32.xlu0 %v1197
        %v1199 = vpop.xlane.xlu0 %1198
        %v1200 = vmax.f32 %v1151, %v1153
        %1201 = vmax.xlane.f32.xlu0 %v1200
        %v1202 = vpop.xlane.xlu0 %1201
        %v1203 = vsub.f32 %v1077, %v1157
        %v1204 = vsub.f32 %v1079, %v1157
        %v1205 = vsub.f32 %v1081, %v1160
        %v1206 = vsub.f32 %v1083, %v1160
        %v1207 = vsub.f32 %v1087, %v1163
        %v1208 = vsub.f32 %v1089, %v1163
        %v1209 = vsub.f32 %v1091, %v1166
        %v1210 = vsub.f32 %v1093, %v1166
        %v1211 = vsub.f32 %v1097, %v1169
        %v1212 = vsub.f32 %v1099, %v1169
        %v1213 = vsub.f32 %v1101, %v1172
        %v1214 = vsub.f32 %v1103, %v1172
        %v1215 = vsub.f32 %v1107, %v1175
        %v1216 = vsub.f32 %v1109, %v1175
        %v1217 = vsub.f32 %v1111, %v1178
        %v1218 = vsub.f32 %v1113, %v1178
        %v1219 = vsub.f32 %v1117, %v1181
        %v1220 = vsub.f32 %v1119, %v1181
        %v1221 = vsub.f32 %v1121, %v1184
        %v1222 = vsub.f32 %v1123, %v1184
        %v1223 = vsub.f32 %v1127, %v1187
        %v1224 = vsub.f32 %v1129, %v1187
        %v1225 = vsub.f32 %v1131, %v1190
        %v1226 = vsub.f32 %v1133, %v1190
        %v1227 = vsub.f32 %v1137, %v1193
        %v1228 = vsub.f32 %v1139, %v1193
        %v1229 = vsub.f32 %v1141, %v1196
        %v1230 = vsub.f32 %v1143, %v1196
        %v1231 = vsub.f32 %v1147, %v1199
        %v1232 = vsub.f32 %v1149, %v1199
        %v1233 = vsub.f32 %v1151, %v1202
        %v1234 = vsub.f32 %v1153, %v1202
        %v1235 = vmul.f32 %v1203, 1.442695
        %v1236 = vpow.pop %v1235
        %v1237 = vmul.f32 %v1204, 1.442695
        %v1238 = vpow.pop %v1237
        %v1239 = vmul.f32 %v1205, 1.442695
        %v1240 = vpow.pop %v1239
        %v1241 = vmul.f32 %v1206, 1.442695
        %v1242 = vpow.pop %v1241
        %v1243 = vmul.f32 %v1207, 1.442695
        %v1244 = vpow.pop %v1243
        %v1245 = vmul.f32 %v1208, 1.442695
        %v1246 = vpow.pop %v1245
        %v1247 = vmul.f32 %v1209, 1.442695
        %v1248 = vpow.pop %v1247
        %v1249 = vmul.f32 %v1210, 1.442695
        %v1250 = vpow.pop %v1249
        %v1251 = vmul.f32 %v1211, 1.442695
        %v1252 = vpow.pop %v1251
        %v1253 = vmul.f32 %v1212, 1.442695
        %v1254 = vpow.pop %v1253
        %v1255 = vmul.f32 %v1213, 1.442695
        %v1256 = vpow.pop %v1255
        %v1257 = vmul.f32 %v1214, 1.442695
        %v1258 = vpow.pop %v1257
        %v1259 = vmul.f32 %v1215, 1.442695
        %v1260 = vpow.pop %v1259
        %v1261 = vmul.f32 %v1216, 1.442695
        %v1262 = vpow.pop %v1261
        %v1263 = vmul.f32 %v1217, 1.442695
        %v1264 = vpow.pop %v1263
        %v1265 = vmul.f32 %v1218, 1.442695
        %v1266 = vpow.pop %v1265
        %v1267 = vmul.f32 %v1219, 1.442695
        %v1268 = vpow.pop %v1267
        %v1269 = vmul.f32 %v1220, 1.442695
        %v1270 = vpow.pop %v1269
        %v1271 = vmul.f32 %v1221, 1.442695
        %v1272 = vpow.pop %v1271
        %v1273 = vmul.f32 %v1222, 1.442695
        %v1274 = vpow.pop %v1273
        %v1275 = vmul.f32 %v1223, 1.442695
        %v1276 = vpow.pop %v1275
        %v1277 = vmul.f32 %v1224, 1.442695
        %v1278 = vpow.pop %v1277
        %v1279 = vmul.f32 %v1225, 1.442695
        %v1280 = vpow.pop %v1279
        %v1281 = vmul.f32 %v1226, 1.442695
        %v1282 = vpow.pop %v1281
        %v1283 = vmul.f32 %v1227, 1.442695
        %v1284 = vpow.pop %v1283
        %v1285 = vmul.f32 %v1228, 1.442695
        %v1286 = vpow.pop %v1285
        %v1287 = vmul.f32 %v1229, 1.442695
        %v1288 = vpow.pop %v1287
        %v1289 = vmul.f32 %v1230, 1.442695
        %v1290 = vpow.pop %v1289
        %v1291 = vmul.f32 %v1231, 1.442695
        %v1292 = vpow.pop %v1291
        %v1293 = vmul.f32 %v1232, 1.442695
        %v1294 = vpow.pop %v1293
        %v1295 = vmul.f32 %v1233, 1.442695
        %v1296 = vpow.pop %v1295
        %v1297 = vmul.f32 %v1234, 1.442695
        %v1298 = vpow.pop %v1297
        %v1299 = vadd.f32 %v1236, %v1238
        %1300 = vadd.xlane.f32.xlu0 %v1299
        %v1301 = vpop.xlane.xlu0 %1300
        %v1302 = vadd.f32 %v1240, %v1242
        %1303 = vadd.xlane.f32.xlu0 %v1302
        %v1304 = vpop.xlane.xlu0 %1303
        %v1305 = vadd.f32 %v1244, %v1246
        %1306 = vadd.xlane.f32.xlu0 %v1305
        %v1307 = vpop.xlane.xlu0 %1306
        %v1308 = vadd.f32 %v1248, %v1250
        %1309 = vadd.xlane.f32.xlu0 %v1308
        %v1310 = vpop.xlane.xlu0 %1309
        %v1311 = vadd.f32 %v1252, %v1254
        %1312 = vadd.xlane.f32.xlu0 %v1311
        %v1313 = vpop.xlane.xlu0 %1312
        %v1314 = vadd.f32 %v1256, %v1258
        %1315 = vadd.xlane.f32.xlu0 %v1314
        %v1316 = vpop.xlane.xlu0 %1315
        %v1317 = vadd.f32 %v1260, %v1262
        %1318 = vadd.xlane.f32.xlu0 %v1317
        %v1319 = vpop.xlane.xlu0 %1318
        %v1320 = vadd.f32 %v1264, %v1266
        %1321 = vadd.xlane.f32.xlu0 %v1320
        %v1322 = vpop.xlane.xlu0 %1321
        %v1323 = vadd.f32 %v1268, %v1270
        %1324 = vadd.xlane.f32.xlu0 %v1323
        %v1325 = vpop.xlane.xlu0 %1324
        %v1326 = vadd.f32 %v1272, %v1274
        %1327 = vadd.xlane.f32.xlu0 %v1326
        %v1328 = vpop.xlane.xlu0 %1327
        %v1329 = vadd.f32 %v1276, %v1278
        %1330 = vadd.xlane.f32.xlu0 %v1329
        %v1331 = vpop.xlane.xlu0 %1330
        %v1332 = vadd.f32 %v1280, %v1282
        %1333 = vadd.xlane.f32.xlu0 %v1332
        %v1334 = vpop.xlane.xlu0 %1333
        %v1335 = vadd.f32 %v1284, %v1286
        %1336 = vadd.xlane.f32.xlu0 %v1335
        %v1337 = vpop.xlane.xlu0 %1336
        %v1338 = vadd.f32 %v1288, %v1290
        %1339 = vadd.xlane.f32.xlu0 %v1338
        %v1340 = vpop.xlane.xlu0 %1339
        %v1341 = vadd.f32 %v1292, %v1294
        %1342 = vadd.xlane.f32.xlu0 %v1341
        %v1343 = vpop.xlane.xlu0 %1342
        %v1344 = vadd.f32 %v1296, %v1298
        %1345 = vadd.xlane.f32.xlu0 %v1344
        %v1346 = vpop.xlane.xlu0 %1345
        %v1347 = vrcp.pop %v1301
        %v1348 = vrcp.pop %v1304
        %v1349 = vrcp.pop %v1307
        %v1350 = vrcp.pop %v1310
        %v1351 = vrcp.pop %v1313
        %v1352 = vrcp.pop %v1316
        %v1353 = vrcp.pop %v1319
        %v1354 = vrcp.pop %v1322
        %v1355 = vrcp.pop %v1325
        %v1356 = vrcp.pop %v1328
        %v1357 = vrcp.pop %v1331
        %v1358 = vrcp.pop %v1334
        %v1359 = vrcp.pop %v1337
        %v1360 = vrcp.pop %v1340
        %v1361 = vrcp.pop %v1343
        %v1362 = vrcp.pop %v1346
        %v1363 = vmul.f32 %v1236, %v1347
        %v1364 = vmul.f32 %v1238, %v1347
        %v1365 = vmul.f32 %v1240, %v1348
        %v1366 = vmul.f32 %v1242, %v1348
        %v1367 = vmul.f32 %v1244, %v1349
        %v1368 = vmul.f32 %v1246, %v1349
        %v1369 = vmul.f32 %v1248, %v1350
        %v1370 = vmul.f32 %v1250, %v1350
        %v1371 = vmul.f32 %v1252, %v1351
        %v1372 = vmul.f32 %v1254, %v1351
        %v1373 = vmul.f32 %v1256, %v1352
        %v1374 = vmul.f32 %v1258, %v1352
        %v1375 = vmul.f32 %v1260, %v1353
        %v1376 = vmul.f32 %v1262, %v1353
        %v1377 = vmul.f32 %v1264, %v1354
        %v1378 = vmul.f32 %v1266, %v1354
        %v1379 = vmul.f32 %v1268, %v1355
        %v1380 = vmul.f32 %v1270, %v1355
        %v1381 = vmul.f32 %v1272, %v1356
        %v1382 = vmul.f32 %v1274, %v1356
        %v1383 = vmul.f32 %v1276, %v1357
        %v1384 = vmul.f32 %v1278, %v1357
        %v1385 = vmul.f32 %v1280, %v1358
        %v1386 = vmul.f32 %v1282, %v1358
        %v1387 = vmul.f32 %v1284, %v1359
        %v1388 = vmul.f32 %v1286, %v1359
        %v1389 = vmul.f32 %v1288, %v1360
        %v1390 = vmul.f32 %v1290, %v1360
        %v1391 = vmul.f32 %v1292, %v1361
        %v1392 = vmul.f32 %v1294, %v1361
        %v1393 = vmul.f32 %v1296, %v1362
        %v1394 = vmul.f32 %v1298, %v1362
        %v1395 = vadd.f32 %v1363, %v1365
        %v1396 = vadd.f32 %v1395, %v1367
        %v1397 = vadd.f32 %v1396, %v1369
        %v1398 = vadd.f32 %v1397, %v1371
        %v1399 = vadd.f32 %v1398, %v1373
        %v1400 = vadd.f32 %v1399, %v1375
        %v1401 = vadd.f32 %v1400, %v1377
        %v1402 = vadd.f32 %v1401, %v1379
        %v1403 = vadd.f32 %v1402, %v1381
        %v1404 = vadd.f32 %v1403, %v1383
        %v1405 = vadd.f32 %v1404, %v1385
        %v1406 = vadd.f32 %v1405, %v1387
        %v1407 = vadd.f32 %v1406, %v1389
        %v1408 = vadd.f32 %v1407, %v1391
        %v1409 = vadd.f32 %v1408, %v1393
        %v1410 = vrot.slane %v1409, 4
        %v1411 = vadd.f32 %v1409, %v1410
        %v1412 = vrot.slane %v1411, 2
        %v1413 = vadd.f32 %v1411, %v1412
        %v1414 = vrot.slane %v1413, 1
        %v1415 = vadd.f32 %v1413, %v1414
        %v1416 = vadd.f32 %v1364, %v1366
        %v1417 = vadd.f32 %v1416, %v1368
        %v1418 = vadd.f32 %v1417, %v1370
        %v1419 = vadd.f32 %v1418, %v1372
        %v1420 = vadd.f32 %v1419, %v1374
        %v1421 = vadd.f32 %v1420, %v1376
        %v1422 = vadd.f32 %v1421, %v1378
        %v1423 = vadd.f32 %v1422, %v1380
        %v1424 = vadd.f32 %v1423, %v1382
        %v1425 = vadd.f32 %v1424, %v1384
        %v1426 = vadd.f32 %v1425, %v1386
        %v1427 = vadd.f32 %v1426, %v1388
        %v1428 = vadd.f32 %v1427, %v1390
        %v1429 = vadd.f32 %v1428, %v1392
        %v1430 = vadd.f32 %v1429, %v1394
        %v1431 = vrot.slane %v1430, 4
        %v1432 = vadd.f32 %v1430, %v1431
        %v1433 = vrot.slane %v1432, 2
        %v1434 = vadd.f32 %v1432, %v1433
        %v1435 = vrot.slane %v1434, 1
        %v1436 = vadd.f32 %v1434, %v1435
        %v1437 = vadd.f32 %v1415, 1e-09
        %v1438 = vadd.f32 %v1436, 1e-09
        %v1439 = vrcp.pop %v1437
        %v1440 = vrcp.pop %v1438
        %v1441 = vmul.f32 %v1363, %v1439
        %v1442 = vmul.f32 %v1364, %v1440
        %v1443 = vmul.f32 %v1365, %v1439
        %v1444 = vmul.f32 %v1366, %v1440
        %v1445 = vmul.f32 %v1367, %v1439
        %v1446 = vmul.f32 %v1368, %v1440
        %v1447 = vmul.f32 %v1369, %v1439
        %v1448 = vmul.f32 %v1370, %v1440
        %v1449 = vmul.f32 %v1371, %v1439
        %v1450 = vmul.f32 %v1372, %v1440
        %v1451 = vmul.f32 %v1373, %v1439
        %v1452 = vmul.f32 %v1374, %v1440
        %v1453 = vmul.f32 %v1375, %v1439
        %v1454 = vmul.f32 %v1376, %v1440
        %v1455 = vmul.f32 %v1377, %v1439
        %v1456 = vmul.f32 %v1378, %v1440
        %v1457 = vmul.f32 %v1379, %v1439
        %v1458 = vmul.f32 %v1380, %v1440
        %v1459 = vmul.f32 %v1381, %v1439
        %v1460 = vmul.f32 %v1382, %v1440
        %v1461 = vmul.f32 %v1383, %v1439
        %v1462 = vmul.f32 %v1384, %v1440
        %v1463 = vmul.f32 %v1385, %v1439
        %v1464 = vmul.f32 %v1386, %v1440
        %v1465 = vmul.f32 %v1387, %v1439
        %v1466 = vmul.f32 %v1388, %v1440
        %v1467 = vmul.f32 %v1389, %v1439
        %v1468 = vmul.f32 %v1390, %v1440
        %v1469 = vmul.f32 %v1391, %v1439
        %v1470 = vmul.f32 %v1392, %v1440
        %v1471 = vmul.f32 %v1393, %v1439
        %v1472 = vmul.f32 %v1394, %v1440
        %v1473 = vld [vmem:[#allocation11] sm:$0xf]
        %v1474 = vld [vmem:[#allocation11 + $0x4] sm:$0xf]
        %v1475 = vld [vmem:[#allocation11 + $0x8] sm:$0xf]
        %v1476 = vld [vmem:[#allocation11 + $0xc] sm:$0xf]
        %v1477 = vpack.c.bf16 %v1443, %v1441
        %v1478 = vpack.c.bf16 %v1444, %v1442
        %v1479 = vpack.c.bf16 %v1447, %v1445
        %v1480 = vpack.c.bf16 %v1448, %v1446
        %v1481 = vpack.c.bf16 %v1451, %v1449
        %v1482 = vpack.c.bf16 %v1452, %v1450
        %v1483 = vpack.c.bf16 %v1455, %v1453
        %v1484 = vpack.c.bf16 %v1456, %v1454
        %v1485 = vpack.c.bf16 %v1459, %v1457
        %v1486 = vpack.c.bf16 %v1460, %v1458
        %v1487 = vpack.c.bf16 %v1463, %v1461
        %v1488 = vpack.c.bf16 %v1464, %v1462
        %v1489 = vpack.c.bf16 %v1467, %v1465
        %v1490 = vpack.c.bf16 %v1468, %v1466
        %v1491 = vpack.c.bf16 %v1471, %v1469
        %v1492 = vpack.c.bf16 %v1472, %v1470
        %v1493 = vld [vmem:[#allocation12] sm:$0xff]
        %v1494 = vld [vmem:[#allocation12 + $0x8] sm:$0xff]
        %v1495 = vld [vmem:[#allocation12 + $0x10] sm:$0xff]
        %v1496 = vld [vmem:[#allocation12 + $0x18] sm:$0xff]
        %1498 = vset.pattern.permute.xlu0 0
        %1499 = vperm.xlu0 %1498, %v1493
        %v1500 = vpop.permute.xlu0 %1499
        %1503 = vset.pattern.permute.xlu0 0
        %1504 = vperm.xlu0 %1503, %v1494
        %v1505 = vpop.permute.xlu0 %1504
        %1508 = vset.pattern.permute.xlu0 0
        %1509 = vperm.xlu0 %1508, %v1495
        %v1510 = vpop.permute.xlu0 %1509
        %1513 = vset.pattern.permute.xlu0 0
        %1514 = vperm.xlu0 %1513, %v1496
        %v1515 = vpop.permute.xlu0 %1514
        %v1521 = vunpack.c.l.b16 %v1473
        %v1522 = vunpack.c.l.b16 %v1474
        %v1523 = vunpack.c.l.b16 %v1475
        %v1524 = vunpack.c.l.b16 %v1476
        %v1525 = vpack.c.b16 %v1522, %v1521
        %v1526 = vpack.c.b16 %v1524, %v1523
        %1529 = vmatprep.subr.bf16.mxu0 %v1478
        %1530 = vmatpush1.bf16.msra.mxu0 %v1477
        %1531 = vmatprep.subr.bf16.mxu0 %v1480
        %1532 = vmatpush1.bf16.msra.mxu0 %v1479
        %1533 = vmatprep.subr.bf16.mxu0 %v1482
        %1534 = vmatpush1.bf16.msra.mxu0 %v1481
        %1535 = vmatprep.subr.bf16.mxu0 %v1484
        %1536 = vmatpush1.bf16.msra.mxu0 %v1483
        %1537 = vmatprep.subr.bf16.mxu0 %v1486
        %1538 = vmatpush1.bf16.msra.mxu0 %v1485
        %1539 = vmatprep.subr.bf16.mxu0 %v1488
        %1540 = vmatpush1.bf16.msra.mxu0 %v1487
        %1541 = vmatprep.subr.bf16.mxu0 %v1490
        %1542 = vmatpush1.bf16.msra.mxu0 %v1489
        %1543 = vmatprep.subr.bf16.mxu0 %v1492
        %1544 = vmatpush1.bf16.msra.mxu0 %v1491
        %1545 = vmatprep.subr.bf16.mxu0 0
        %1546 = vmatpush1.bf16.msra.mxu0 0
        %1547 = vmatprep.subr.bf16.mxu0 0
        %1548 = vmatpush1.bf16.msra.mxu0 0
        %1549 = vmatprep.subr.bf16.mxu0 0
        %1550 = vmatpush1.bf16.msra.mxu0 0
        %1551 = vmatprep.subr.bf16.mxu0 0
        %1552 = vmatpush1.bf16.msra.mxu0 0
        %1553 = vmatprep.subr.bf16.mxu0 0
        %1554 = vmatpush1.bf16.msra.mxu0 0
        %1555 = vmatprep.subr.bf16.mxu0 0
        %1556 = vmatpush1.bf16.msra.mxu0 0
        %1557 = vmatprep.subr.bf16.mxu0 0
        %1558 = vmatpush1.bf16.msra.mxu0 0
        %1559 = vmatprep.subr.bf16.mxu0 0
        %1560 = vmatpush1.bf16.msra.mxu0 0
        %1561 = vmatprep.mubr.bf16.mxu0 0
        %1562 = vmatmul.mubr.bf16.gmra.mrb[0].mxu0 %v1525
        %v1563 = vpop.f32.mrb[0].mxu0
        %v1564 = vadd.f32 %v1500, %v1563
        %v1565 = vpop.f32.mrb[0].mxu0
        %v1566 = vadd.f32 %v1500, %v1565
        %v1567 = vpop.f32.mrb[0].mxu0
        %v1568 = vadd.f32 %v1505, %v1567
        %v1569 = vpop.f32.mrb[0].mxu0
        %v1570 = vadd.f32 %v1505, %v1569
        %1571 = vmatprep.mubr.bf16.mxu0 0
        %1572 = vmatmul.mubr.bf16.gmra.mrb[0].mxu0 %v1526
        %v1573 = vpop.f32.mrb[0].mxu0
        %v1574 = vadd.f32 %v1510, %v1573
        %v1575 = vpop.f32.mrb[0].mxu0
        %v1576 = vadd.f32 %v1510, %v1575
        %v1577 = vpop.f32.mrb[0].mxu0
        %v1578 = vadd.f32 %v1515, %v1577
        %v1579 = vpop.f32.mrb[0].mxu0
        %v1580 = vadd.f32 %v1515, %v1579
        %1581 = vdwg.mxu0
        %v1582 = vunpack.c.l.bf16 %v344
        %v1583 = vunpack.c.h.bf16 %v344
        %v1584 = vunpack.c.l.bf16 %v345
        %v1585 = vunpack.c.h.bf16 %v345
        %v1586 = vunpack.c.l.bf16 %v346
        %v1587 = vunpack.c.h.bf16 %v346
        %v1588 = vunpack.c.l.bf16 %v347
        %v1589 = vunpack.c.h.bf16 %v347
        %v1590 = vadd.f32 %v1564, %v1582
        %v1591 = vadd.f32 %v1566, %v1583
        %v1592 = vadd.f32 %v1568, %v1584
        %v1593 = vadd.f32 %v1570, %v1585
        %v1594 = vadd.f32 %v1574, %v1586
        %v1595 = vadd.f32 %v1576, %v1587
        %v1596 = vadd.f32 %v1578, %v1588
        %v1597 = vadd.f32 %v1580, %v1589
        %v1598 = vmax.f32 %v1590, 0.0
        %v1599 = vmax.f32 %v1591, 0.0
        %v1600 = vmax.f32 %v1592, 0.0
        %v1601 = vmax.f32 %v1593, 0.0
        %v1602 = vmax.f32 %v1594, 0.0
        %v1603 = vmax.f32 %v1595, 0.0
        %v1604 = vmax.f32 %v1596, 0.0
        %v1605 = vmax.f32 %v1597, 0.0
        %v1606 = vpack.c.bf16 %v1600, %v1598
        %v1607 = vpack.c.bf16 %v1601, %v1599
        %v1608 = vpack.c.bf16 %v1604, %v1602
        %v1609 = vpack.c.bf16 %v1605, %v1603
        %v1614 = vunpack.c.l.b16 %v1606
        %v1615 = vunpack.c.l.b16 %v1607
        %v1616 = vunpack.c.h.b16 %v1606
        %v1617 = vunpack.c.h.b16 %v1607
        %v1618 = vunpack.c.l.b16 %v1608
        %v1619 = vunpack.c.l.b16 %v1609
        %v1620 = vunpack.c.h.b16 %v1608
        %v1621 = vunpack.c.h.b16 %v1609
        %v1622 = vpack.c.b16 %v1615, %v1614
        %v1623 = vpack.c.b16 %v1617, %v1616
        %v1624 = vpack.c.b16 %v1619, %v1618
        %v1625 = vpack.c.b16 %v1621, %v1620
        %1630 = vst [vmem:[%s342] sm:$0xff] %v1622
        %1631 = vst [vmem:[%s342 + $0x8] sm:$0xff] %v1623
        %1632 = vst [vmem:[%s342 + $0x10] sm:$0xff] %v1624
        %1633 = vst [vmem:[%s342 + $0x18] sm:$0xff] %v1625
        %s1634 = sand.u32 %s165, 1
        %s1635 = scalar_lea.sflag [#allocation5], %s1634
        %s1636 = sand.u32 %s165, 1
        %s1637 = smul.addr %s1636, 32
        %s1638 = scalar_lea.vmem [#allocation14], %s1637
        // Predicated region
        $region69: #{tpu_custom_call.1} parent=43 // pred_check
          %p1639 = pneg %p175
        $region70: #{tpu_custom_call.1} parent=43 // pred_check_branch
          %1641 = sbr.rel (%p1639) target = $region72
        $region71: #{tpu_custom_call.1} parent=43 // pred_region
          %s1643 = ssub.s32 512, 512
          %1644 = vsyncadd %s1635, %s1643
          %s1645 = smul.addr %s26, 8
          %s1646 = smul.addr %s1645, 64
          %s1647 = scalar_lea.hbm %s6, %s1646
          %s1648 = sshll.u32 %s1638, 4
          %s1649 = int_to_ptr.vmem [resolvable:$true] %s1648
          %1654 = dma.vmem_to_hbm [thread:$0]  %s1649, 512, %s1647, %s1635, 128, 128, 8
        $region72: #{tpu_custom_call.1} parent=43 // pred_fallthru
          _
      $region44: #{tpu_custom_call.1} parent=5 // pred_fallthru
        _
      %p1655 = scmp.le.s32.totalorder 2, %s21
      // Predicated region
      $region73: #{tpu_custom_call.1} parent=5 // pred_check
        %p1656 = pneg %p1655
      $region74: #{tpu_custom_call.1} parent=5 // pred_check_branch
        %1658 = sbr.rel (%p1656) target = $region76
      $region75: #{tpu_custom_call.1} parent=5 // pred_region
        %s1659 = ssub.s32 %s21, 2
        // Predicated region
        $region77: #{tpu_custom_call.1} parent=75 // pred_check
          %p1660 = pneg %p181
        $region78: #{tpu_custom_call.1} parent=75 // pred_check_branch
          %1662 = sbr.rel (%p1660) target = $region80
        $region79: #{tpu_custom_call.1} parent=75 // pred_region
          %s1663 = sand.u32 %s166, 1
          %s1664 = scalar_lea.sflag [#allocation5], %s1663
          %s1665 = sand.u32 %s166, 1
          %s1666 = smul.addr %s1665, 32
          %s1667 = scalar_lea.vmem [#allocation14], %s1666
          %1668 = dma.done %s1664, 512
        $region80: #{tpu_custom_call.1} parent=75 // pred_fallthru
          _
      $region76: #{tpu_custom_call.1} parent=5 // pred_fallthru
        _
    $region6: #{tpu_custom_call.1} parent=1 // loop_footer
      %s25 = sadd.s32 1, %s21
    $region7: #{tpu_custom_call.1} parent=1 // loop_footer_branch
      %20 = sbr.rel target = $region3
    $region8: #{tpu_custom_call.1} parent=1 // loop_exit
      _
    %1669 = vsyncpa [#allocation4], 1
    %s1670 = scalar_lea.sflag [#allocation4], 1
    %1671 = vsyncpa %s1670, 1
    %1672 = vsyncpa [#allocation7], 1
    %1673 = vsyncpa [#allocation10], 1
    %1674 = vsyncpa [#allocation13], 1
    %1675 = vsyncpa [#allocation5], 1
    %s1676 = scalar_lea.sflag [#allocation5], 1
    %1677 = vsyncpa %s1676, 1

</llo_original>
